<compile_context>
chip_gen: v7x
topology: tpu7x:2x2x1
jax: 0.10.0
libtpu: 0.0.40
codegen_flags: <defaults>
</compile_context>

<pallas_src>
import functools

import jax
import jax.numpy as jnp
import numpy as np
from jax.experimental import pallas as pl
from jax.experimental.pallas import tpu as pltpu


def _shortcut_kernel(x_ref, sel_ref, o_ref, *, c_in, ch_pad, tb):
    """Option-A shortcut on one batch block.

    x_ref:   (tb, C, H*W)               flat-spatial input tile (VMEM)
    sel_ref: (H*W, Ho*Wo)               constant 0/1 even-row/even-col selection
    o_ref:   (tb, C + 2*ch_pad, Ho*Wo)  flat-spatial output tile (VMEM)
    """
    s_out = o_ref.shape[-1]

    # Zero only the channel-pad bands: two lane-dense stores for the whole
    # block.  The data band below is written exactly once.
    if ch_pad > 0:
        zeros = jnp.zeros((o_ref.shape[0], ch_pad, s_out), dtype=o_ref.dtype)
        o_ref[:, :ch_pad, :] = zeros
        o_ref[:, ch_pad + c_in:, :] = zeros

    sel = sel_ref[...]  # hoisted: loaded once per block

    # Deinterleave x[:, ::2, ::2] on the otherwise-idle MXU:
    #   (C, H*W) @ (H*W, Ho*Wo) with a 0/1 selection matrix produces the
    #   downsampled rows lane-dense, so the data band is written with a single
    #   full-lane-width store per batch element (no lane-stride-2 loads, no
    #   narrow masked stores).
    for bi in range(tb):  # static unroll; tb is capped in the wrapper
        y = jnp.dot(x_ref[bi], sel,
                    preferred_element_type=jnp.float32,
                    precision=jax.lax.Precision.HIGHEST)
        o_ref[bi, ch_pad:ch_pad + c_in, :] = y.astype(o_ref.dtype)


def _tpu_vmem_and_cores():
    """Best-effort (never raises) query of per-core VMEM bytes and #TensorCores."""
    vmem_cap = 64 * 1024 * 1024          # v7x per-core VMEM: safe lower bound
    num_cores = 1
    try:
        info = pltpu.get_tpu_info()
        cap = getattr(info, "vmem_capacity_bytes", None)
        if isinstance(cap, int) and cap > 0:
            vmem_cap = cap
        for name in ("num_cores", "core_count", "num_tensorcores"):
            nc = getattr(info, name, None)
            if isinstance(nc, int) and nc > 0:
                num_cores = nc
                break
    except Exception:
        pass
    if num_cores == 1:
        try:
            dev = jax.devices()[0]
            for name in ("num_cores", "core_count"):
                nc = getattr(dev, name, None)
                if isinstance(nc, int) and nc > 0:
                    num_cores = nc
                    break
        except Exception:
            pass
    return vmem_cap, num_cores


def _round_up(n, m):
    return ((n + m - 1) // m) * m


def lambda_layer(x, *, tile_budget_bytes=None, max_unroll=128):
    """Pallas implementation of the CIFAR-ResNet option-A shortcut lambda.

    x: (B, C, H, W) NCHW array (float32 / bfloat16).
    returns: (B, C + 2*((2*C)//4), ceil(H/2), ceil(W/2))
    """
    b, c, h, w = x.shape
    planes = 2 * c                      # option-A relationship in models_utils.py
    ch_pad = planes // 4
    c_out = c + 2 * ch_pad
    h_out = -(-h // 2)                  # ceil -> matches x[:, :, ::2, ::2]
    w_out = -(-w // 2)
    s_in = h * w
    s_out = h_out * w_out
    dtype = x.dtype
    itemsize = jnp.dtype(dtype).itemsize

    # Constant 0/1 selection matrix: column (ho*Wo + wo) picks flat input
    # element (2*ho*W + 2*wo).  <= 1 MiB for CIFAR-sized feature maps.
    src = (2 * np.arange(h_out))[:, None] * w + (2 * np.arange(w_out))[None, :]
    sel_np = np.zeros((s_in, s_out), dtype=np.float32)
    sel_np[src.reshape(-1), np.arange(s_out)] = 1.0
    sel = jnp.asarray(sel_np, dtype=dtype)

    # ---- batch-block sizing against real VMEM (double-buffered, padded) ----
    vmem_cap, num_cores = _tpu_vmem_and_cores()
    if tile_budget_bytes is None:
        # single-copy (in+out) tile budget; with 2x double-buffering the live
        # footprint stays around vmem_cap/4 (safe on v7x's 64 MiB, roomy on
        # v5e/v6e's 128 MiB).
        tile_budget_bytes = max(2 * 1024 * 1024, vmem_cap // 8)

    sub = max(8, 32 // itemsize)        # sublane pad (packed dtypes pack rows)
    per_elem = (_round_up(c, sub) * _round_up(s_in, 128)
                + _round_up(c_out, sub) * _round_up(s_out, 128)) * itemsize
    tb = max(1, min(b, tile_budget_bytes // max(1, per_elem)))
    if num_cores > 1:
        # keep >=2 grid steps per TensorCore so each core's pipeline overlaps
        tb = min(tb, max(1, -(-b // (2 * num_cores))))
    tb = min(tb, max_unroll)            # bound the static unroll / compile time
    grid = pl.cdiv(b, tb)               # uneven tail block is clipped by Pallas

    sel_bytes = _round_up(s_in, sub) * _round_up(s_out, 128) * itemsize
    needed = 2 * (tb * per_elem + sel_bytes) + (2 << 20)
    vmem_limit = int(min(vmem_cap, max(needed, 16 << 20)))

    x_flat = x.reshape(b, c, s_in)      # lane-dense flat-spatial view (free)

    kernel = functools.partial(_shortcut_kernel, c_in=c, ch_pad=ch_pad, tb=tb)

    out_flat = pl.pallas_call(
        kernel,
        out_shape=jax.ShapeDtypeStruct((b, c_out, s_out), dtype),
        grid_spec=pltpu.PrefetchScalarGridSpec(
            num_scalar_prefetch=0,
            grid=(grid,),
            in_specs=[
                pl.BlockSpec((tb, c, s_in), lambda i: (i, 0, 0)),
                pl.BlockSpec((s_in, s_out), lambda i: (0, 0)),  # resident const
            ],
            out_specs=pl.BlockSpec((tb, c_out, s_out), lambda i: (i, 0, 0)),
        ),
        compiler_params=pltpu.CompilerParams(
            dimension_semantics=("parallel",),
            vmem_limit_bytes=vmem_limit),
        cost_estimate=pl.CostEstimate(
            flops=2 * b * c * s_in * s_out,
            transcendentals=0,
            bytes_accessed=(b * c * s_in + b * c_out * s_out
                            + s_in * s_out) * itemsize),
    )(x_flat, sel)

    return out_flat.reshape(b, c_out, h_out, w_out)


if __name__ == "__main__":
    key = jax.random.PRNGKey(0)
    x = jax.random.normal(key, (2, 4, 16, 16), dtype=jnp.float32)

    out = jax.block_until_ready(lambda_layer(x))

    # Pure-JAX reference for the wrapped lambda.
    ref = x[:, :, ::2, ::2]
    ref = jnp.pad(ref, ((0, 0), (2, 2), (0, 0), (0, 0)))

    assert out.shape == (2, 8, 8, 8), out.shape
    assert jnp.allclose(out, ref, rtol=1e-6, atol=1e-6), "mismatch vs reference"

    print("KERNEL_OK")
</pallas_src>

<mosaic_0001>
module attributes {stable_mosaic.version = 11 : i64} {
  func.func @_shortcut_kernel(%arg0: i32, %arg1: memref<2x4x256xf32, #tpu.memory_space<vmem>>, %arg2: memref<256x64xf32, #tpu.memory_space<vmem>>, %arg3: memref<2x8x64xf32, #tpu.memory_space<vmem>>) attributes {dimension_semantics = [#tpu.dimension_semantics<parallel>], iteration_bounds = array<i64: 1>, scalar_prefetch = 0 : i64, scratch_operands = 0 : i64, tpu.core_type = #tpu.core_type<tc>, window_params = [{transform_indices = @transform_0, window_bounds = array<i64: 2, 4, 256>}, {pipeline_mode = #tpu.pipeline_mode<synchronous>, transform_indices = @transform_1, window_bounds = array<i64: 256, 64>}, {transform_indices = @transform_2, window_bounds = array<i64: 2, 8, 64>}]} {
    %cst = arith.constant 0.000000e+00 : f32
    %0 = vector.broadcast %cst : f32 to vector<2x2x64xf32>
    %c0 = arith.constant 0 : index
    %c0_0 = arith.constant 0 : index
    %c0_1 = arith.constant 0 : index
    %1 = vector.load %arg3[%c0, %c0_0, %c0_1] : memref<2x8x64xf32, #tpu.memory_space<vmem>>, vector<2x2x64xf32>
    tpu.vector_store %arg3[%c0, %c0_0, %c0_1], %0 {strides = array<i32>} : memref<2x8x64xf32, #tpu.memory_space<vmem>>, vector<2x2x64xf32>,
    %c0_2 = arith.constant 0 : index
    %c6 = arith.constant 6 : index
    %c0_3 = arith.constant 0 : index
    %2 = vector.load %arg3[%c0_2, %c6, %c0_3] : memref<2x8x64xf32, #tpu.memory_space<vmem>>, vector<2x2x64xf32>
    tpu.vector_store %arg3[%c0_2, %c6, %c0_3], %0 {strides = array<i32>} : memref<2x8x64xf32, #tpu.memory_space<vmem>>, vector<2x2x64xf32>,
    %c0_4 = arith.constant 0 : index
    %c0_5 = arith.constant 0 : index
    %3 = vector.load %arg2[%c0_4, %c0_5] : memref<256x64xf32, #tpu.memory_space<vmem>>, vector<256x64xf32>
    %c0_6 = arith.constant 0 : index
    %c0_7 = arith.constant 0 : index
    %c0_8 = arith.constant 0 : index
    %4 = vector.load %arg1[%c0_6, %c0_7, %c0_8] : memref<2x4x256xf32, #tpu.memory_space<vmem>>, vector<1x4x256xf32>
    %5 = vector.shape_cast %4 : vector<1x4x256xf32> to vector<4x256xf32>
    %cst_9 = arith.constant dense<0.000000e+00> : vector<4x64xf32>
    %6 = tpu.matmul %5, %3, %cst_9 {dimension_numbers = #tpu.dot_dimension_numbers<[1], [0], [0], [1], [0, 0, 1, 1], [], []>, precision = #tpu.contract_precision<fp32>} : vector<4x256xf32>, vector<256x64xf32>, vector<4x64xf32> -> vector<4x64xf32>
    %c0_10 = arith.constant 0 : index
    %c2 = arith.constant 2 : index
    %c0_11 = arith.constant 0 : index
    %7 = vector.load %arg3[%c0_10, %c2, %c0_11] : memref<2x8x64xf32, #tpu.memory_space<vmem>>, vector<1x4x64xf32>
    %8 = vector.shape_cast %7 : vector<1x4x64xf32> to vector<4x64xf32>
    %9 = vector.shape_cast %6 : vector<4x64xf32> to vector<1x4x64xf32>
    tpu.vector_store %arg3[%c0_10, %c2, %c0_11], %9 {strides = array<i32>} : memref<2x8x64xf32, #tpu.memory_space<vmem>>, vector<1x4x64xf32>,
    %c1 = arith.constant 1 : index
    %c0_12 = arith.constant 0 : index
    %c0_13 = arith.constant 0 : index
    %10 = vector.load %arg1[%c1, %c0_12, %c0_13] : memref<2x4x256xf32, #tpu.memory_space<vmem>>, vector<1x4x256xf32>
    %11 = vector.shape_cast %10 : vector<1x4x256xf32> to vector<4x256xf32>
    %cst_14 = arith.constant dense<0.000000e+00> : vector<4x64xf32>
    %12 = tpu.matmul %11, %3, %cst_14 {dimension_numbers = #tpu.dot_dimension_numbers<[1], [0], [0], [1], [0, 0, 1, 1], [], []>, precision = #tpu.contract_precision<fp32>} : vector<4x256xf32>, vector<256x64xf32>, vector<4x64xf32> -> vector<4x64xf32>
    %c1_15 = arith.constant 1 : index
    %c2_16 = arith.constant 2 : index
    %c0_17 = arith.constant 0 : index
    %13 = vector.load %arg3[%c1_15, %c2_16, %c0_17] : memref<2x8x64xf32, #tpu.memory_space<vmem>>, vector<1x4x64xf32>
    %14 = vector.shape_cast %13 : vector<1x4x64xf32> to vector<4x64xf32>
    %15 = vector.shape_cast %12 : vector<4x64xf32> to vector<1x4x64xf32>
    tpu.vector_store %arg3[%c1_15, %c2_16, %c0_17], %15 {strides = array<i32>} : memref<2x8x64xf32, #tpu.memory_space<vmem>>, vector<1x4x64xf32>,
    return
  }
  func.func @transform_0(%arg0: i32) -> (i32, i32, i32) {
    %c0_i32 = arith.constant 0 : i32
    %c0_i32_0 = arith.constant 0 : i32
    %c0_i32_1 = arith.constant 0 : i32
    return %arg0, %c0_i32, %c0_i32_0 : i32, i32, i32
  }
  func.func @transform_1(%arg0: i32) -> (i32, i32) {
    %c0_i32 = arith.constant 0 : i32
    %c0_i32_0 = arith.constant 0 : i32
    %c0_i32_1 = arith.constant 0 : i32
    return %c0_i32, %c0_i32_0 : i32, i32
  }
  func.func @transform_2(%arg0: i32) -> (i32, i32, i32) {
    %c0_i32 = arith.constant 0 : i32
    %c0_i32_0 = arith.constant 0 : i32
    %c0_i32_1 = arith.constant 0 : i32
    return %arg0, %c0_i32, %c0_i32_0 : i32, i32, i32
  }
}

</mosaic_0001>

<llo_original>
// kernel: tpu_custom_call.1
$region0: #{tpu_custom_call.1}
  #allocation0 [shape = 'u32[]', space=smem, size = 0x4, offset = 0x4, fixed_abs, tag = 'smem constant byte address 0x4 - core index']
  #allocation1 [shape = 'u32[144,128]{1,0:T(1,128)}', space=vmem, size = 0x12000, scoped, tag = 'internal scratch']
  %s0 = inlined_call_operand.vmem [shape: f32[2,4,256], index: 0, kind: input, shape index: {}]
  %s1 = inlined_call_operand.vmem [shape: f32[256,64], index: 1, kind: input, shape index: {}]
  %s2 = inlined_call_operand.hbm [shape: f32[2,8,64], index: 2, kind: output, shape index: {}]
  %s3 = sld [smem:[#allocation0]]
  $region18: #{tpu_custom_call.1} parent=0
    _
  %s5 = ssub.s32 1, %s3
  %s6 = scalar_select 0, %s5, %s3
  $region1: #{tpu_custom_call.1} parent=0
    #allocation2 [shape = 'u8[8192]{0}', space=vmem, size = 0x2000, scoped, tag = 'output window, operand 0, single buffered']
    #allocation3 [shape = 's32[1]{0}', space=sflag, size = 0x4, scoped, tag = 'scoped memory for tpu_custom_call.1']
    %7 = vsyncpa [#allocation3], 0
    // Predicated region
    $region2: #{tpu_custom_call.1} parent=1 // pred_check
      _
    $region3: #{tpu_custom_call.1} parent=1 // pred_check_branch
      %9 = sbr.rel (0) target = $region5
    $region4: #{tpu_custom_call.1} parent=1 // pred_region
      _
    $region5: #{tpu_custom_call.1} parent=1 // pred_fallthru
      _
    // Predicated region
    $region6: #{tpu_custom_call.1} parent=1 // pred_check
      _
    $region7: #{tpu_custom_call.1} parent=1 // pred_check_branch
      %11 = sbr.rel (0) target = $region9
    $region8: #{tpu_custom_call.1} parent=1 // pred_region
      _
    $region9: #{tpu_custom_call.1} parent=1 // pred_fallthru
      _
    %vm12 = vcmask 517120
    %13 = vst.msk [vmem:[#allocation2] sm:$0x3] %vm12, 0.0
    %14 = vst.msk [vmem:[#allocation2 + $0x8] sm:$0x3] %vm12, 0.0
    %15 = vst.msk [vmem:[#allocation2 + $0x6] sm:$0x3] %vm12, 0.0
    %16 = vst.msk [vmem:[#allocation2 + $0xe] sm:$0x3] %vm12, 0.0
    %v17 = vld [vmem:[%s1] sm:$0xff]
    %v18 = vld [vmem:[%s1 + $0x8] sm:$0xff]
    %v19 = vld [vmem:[%s1 + $0x10] sm:$0xff]
    %v20 = vld [vmem:[%s1 + $0x18] sm:$0xff]
    %v21 = vld [vmem:[%s1 + $0x20] sm:$0xff]
    %v22 = vld [vmem:[%s1 + $0x28] sm:$0xff]
    %v23 = vld [vmem:[%s1 + $0x30] sm:$0xff]
    %v24 = vld [vmem:[%s1 + $0x38] sm:$0xff]
    %v25 = vld [vmem:[%s1 + $0x40] sm:$0xff]
    %v26 = vld [vmem:[%s1 + $0x48] sm:$0xff]
    %v27 = vld [vmem:[%s1 + $0x50] sm:$0xff]
    %v28 = vld [vmem:[%s1 + $0x58] sm:$0xff]
    %v29 = vld [vmem:[%s1 + $0x60] sm:$0xff]
    %v30 = vld [vmem:[%s1 + $0x68] sm:$0xff]
    %v31 = vld [vmem:[%s1 + $0x70] sm:$0xff]
    %v32 = vld [vmem:[%s1 + $0x78] sm:$0xff]
    %v33 = vld [vmem:[%s1 + $0x80] sm:$0xff]
    %v34 = vld [vmem:[%s1 + $0x88] sm:$0xff]
    %v35 = vld [vmem:[%s1 + $0x90] sm:$0xff]
    %v36 = vld [vmem:[%s1 + $0x98] sm:$0xff]
    %v37 = vld [vmem:[%s1 + $0xa0] sm:$0xff]
    %v38 = vld [vmem:[%s1 + $0xa8] sm:$0xff]
    %v39 = vld [vmem:[%s1 + $0xb0] sm:$0xff]
    %v40 = vld [vmem:[%s1 + $0xb8] sm:$0xff]
    %v41 = vld [vmem:[%s1 + $0xc0] sm:$0xff]
    %v42 = vld [vmem:[%s1 + $0xc8] sm:$0xff]
    %v43 = vld [vmem:[%s1 + $0xd0] sm:$0xff]
    %v44 = vld [vmem:[%s1 + $0xd8] sm:$0xff]
    %v45 = vld [vmem:[%s1 + $0xe0] sm:$0xff]
    %v46 = vld [vmem:[%s1 + $0xe8] sm:$0xff]
    %v47 = vld [vmem:[%s1 + $0xf0] sm:$0xff]
    %v48 = vld [vmem:[%s1 + $0xf8] sm:$0xff]
    %v49 = vld [vmem:[%s0] sm:$0xff]
    %v51 = vcombine.high %v49, %v49
    %53 = vmatprep.subr.mxu0 0.0
    %v54 = vand.u32 %v17, 4294901760
    %55 = vmatpush1.msra.mxu0 %v54
    %56 = vmatprep.subr.mxu0 0.0
    %v57 = vand.u32 %v18, 4294901760
    %58 = vmatpush1.msra.mxu0 %v57
    %59 = vmatprep.subr.mxu0 0.0
    %v60 = vand.u32 %v19, 4294901760
    %61 = vmatpush1.msra.mxu0 %v60
    %62 = vmatprep.subr.mxu0 0.0
    %v63 = vand.u32 %v20, 4294901760
    %64 = vmatpush1.msra.mxu0 %v63
    %65 = vmatprep.subr.mxu0 0.0
    %v66 = vand.u32 %v21, 4294901760
    %67 = vmatpush1.msra.mxu0 %v66
    %68 = vmatprep.subr.mxu0 0.0
    %v69 = vand.u32 %v22, 4294901760
    %70 = vmatpush1.msra.mxu0 %v69
    %71 = vmatprep.subr.mxu0 0.0
    %v72 = vand.u32 %v23, 4294901760
    %73 = vmatpush1.msra.mxu0 %v72
    %74 = vmatprep.subr.mxu0 0.0
    %v75 = vand.u32 %v24, 4294901760
    %76 = vmatpush1.msra.mxu0 %v75
    %77 = vmatprep.subr.mxu0 0.0
    %v78 = vand.u32 %v25, 4294901760
    %79 = vmatpush1.msra.mxu0 %v78
    %80 = vmatprep.subr.mxu0 0.0
    %v81 = vand.u32 %v26, 4294901760
    %82 = vmatpush1.msra.mxu0 %v81
    %83 = vmatprep.subr.mxu0 0.0
    %v84 = vand.u32 %v27, 4294901760
    %85 = vmatpush1.msra.mxu0 %v84
    %86 = vmatprep.subr.mxu0 0.0
    %v87 = vand.u32 %v28, 4294901760
    %88 = vmatpush1.msra.mxu0 %v87
    %89 = vmatprep.subr.mxu0 0.0
    %v90 = vand.u32 %v29, 4294901760
    %91 = vmatpush1.msra.mxu0 %v90
    %92 = vmatprep.subr.mxu0 0.0
    %v93 = vand.u32 %v30, 4294901760
    %94 = vmatpush1.msra.mxu0 %v93
    %95 = vmatprep.subr.mxu0 0.0
    %v96 = vand.u32 %v31, 4294901760
    %97 = vmatpush1.msra.mxu0 %v96
    %98 = vmatprep.subr.mxu0 0.0
    %v99 = vand.u32 %v32, 4294901760
    %100 = vmatpush1.msra.mxu0 %v99
    %101 = vmatprep.subr.mxu0 0.0
    %v102 = vand.u32 %v33, 4294901760
    %103 = vmatpush1.msra.mxu0 %v102
    %104 = vmatprep.subr.mxu0 0.0
    %v105 = vand.u32 %v34, 4294901760
    %106 = vmatpush1.msra.mxu0 %v105
    %107 = vmatprep.subr.mxu0 0.0
    %v108 = vand.u32 %v35, 4294901760
    %109 = vmatpush1.msra.mxu0 %v108
    %110 = vmatprep.subr.mxu0 0.0
    %v111 = vand.u32 %v36, 4294901760
    %112 = vmatpush1.msra.mxu0 %v111
    %113 = vmatprep.subr.mxu0 0.0
    %v114 = vand.u32 %v37, 4294901760
    %115 = vmatpush1.msra.mxu0 %v114
    %116 = vmatprep.subr.mxu0 0.0
    %v117 = vand.u32 %v38, 4294901760
    %118 = vmatpush1.msra.mxu0 %v117
    %119 = vmatprep.subr.mxu0 0.0
    %v120 = vand.u32 %v39, 4294901760
    %121 = vmatpush1.msra.mxu0 %v120
    %122 = vmatprep.subr.mxu0 0.0
    %v123 = vand.u32 %v40, 4294901760
    %124 = vmatpush1.msra.mxu0 %v123
    %125 = vmatprep.subr.mxu0 0.0
    %v126 = vand.u32 %v41, 4294901760
    %127 = vmatpush1.msra.mxu0 %v126
    %128 = vmatprep.subr.mxu0 0.0
    %v129 = vand.u32 %v42, 4294901760
    %130 = vmatpush1.msra.mxu0 %v129
    %131 = vmatprep.subr.mxu0 0.0
    %v132 = vand.u32 %v43, 4294901760
    %133 = vmatpush1.msra.mxu0 %v132
    %134 = vmatprep.subr.mxu0 0.0
    %v135 = vand.u32 %v44, 4294901760
    %136 = vmatpush1.msra.mxu0 %v135
    %137 = vmatprep.subr.mxu0 0.0
    %v138 = vand.u32 %v45, 4294901760
    %139 = vmatpush1.msra.mxu0 %v138
    %140 = vmatprep.subr.mxu0 0.0
    %v141 = vand.u32 %v46, 4294901760
    %142 = vmatpush1.msra.mxu0 %v141
    %143 = vmatprep.subr.mxu0 0.0
    %v144 = vand.u32 %v47, 4294901760
    %145 = vmatpush1.msra.mxu0 %v144
    %146 = vmatprep.subr.mxu0 0.0
    %v147 = vand.u32 %v48, 4294901760
    %148 = vmatpush1.msra.mxu0 %v147
    %v149 = vand.u32 %v51, 4294901760
    %v150 = vsub.f32 %v51, %v149
    %v151 = vand.u32 %v150, 4294901760
    %v152 = vsub.f32 %v150, %v151
    %v153 = vand.u32 %v152, 4294901760
    %154 = vmatprep.mubr.f32.mxu0 %v153
    %v155 = vand.u32 %v49, 4294901760
    %v156 = vsub.f32 %v49, %v155
    %v157 = vand.u32 %v156, 4294901760
    %v158 = vsub.f32 %v156, %v157
    %v159 = vand.u32 %v158, 4294901760
    %160 = vmatmul.mubr.f32.gmra.mrb[0].mxu0 %v159
    %v161 = vpop.f32.mrb[0].mxu0
    %v162 = vadd.f32 0.0, %v161
    %v163 = vpop.f32.mrb[0].mxu0
    %164 = vdwg.mxu0
    %165 = vmatprep.subr.mxu0 0.0
    %v166 = vand.u32 %v17, 4294901760
    %v167 = vsub.f32 %v17, %v166
    %v168 = vand.u32 %v167, 4294901760
    %v169 = vsub.f32 %v167, %v168
    %v170 = vand.u32 %v169, 4294901760
    %171 = vmatpush1.msra.mxu0 %v170
    %172 = vmatprep.subr.mxu0 0.0
    %v173 = vand.u32 %v18, 4294901760
    %v174 = vsub.f32 %v18, %v173
    %v175 = vand.u32 %v174, 4294901760
    %v176 = vsub.f32 %v174, %v175
    %v177 = vand.u32 %v176, 4294901760
    %178 = vmatpush1.msra.mxu0 %v177
    %179 = vmatprep.subr.mxu0 0.0
    %v180 = vand.u32 %v19, 4294901760
    %v181 = vsub.f32 %v19, %v180
    %v182 = vand.u32 %v181, 4294901760
    %v183 = vsub.f32 %v181, %v182
    %v184 = vand.u32 %v183, 4294901760
    %185 = vmatpush1.msra.mxu0 %v184
    %186 = vmatprep.subr.mxu0 0.0
    %v187 = vand.u32 %v20, 4294901760
    %v188 = vsub.f32 %v20, %v187
    %v189 = vand.u32 %v188, 4294901760
    %v190 = vsub.f32 %v188, %v189
    %v191 = vand.u32 %v190, 4294901760
    %192 = vmatpush1.msra.mxu0 %v191
    %193 = vmatprep.subr.mxu0 0.0
    %v194 = vand.u32 %v21, 4294901760
    %v195 = vsub.f32 %v21, %v194
    %v196 = vand.u32 %v195, 4294901760
    %v197 = vsub.f32 %v195, %v196
    %v198 = vand.u32 %v197, 4294901760
    %199 = vmatpush1.msra.mxu0 %v198
    %200 = vmatprep.subr.mxu0 0.0
    %v201 = vand.u32 %v22, 4294901760
    %v202 = vsub.f32 %v22, %v201
    %v203 = vand.u32 %v202, 4294901760
    %v204 = vsub.f32 %v202, %v203
    %v205 = vand.u32 %v204, 4294901760
    %206 = vmatpush1.msra.mxu0 %v205
    %207 = vmatprep.subr.mxu0 0.0
    %v208 = vand.u32 %v23, 4294901760
    %v209 = vsub.f32 %v23, %v208
    %v210 = vand.u32 %v209, 4294901760
    %v211 = vsub.f32 %v209, %v210
    %v212 = vand.u32 %v211, 4294901760
    %213 = vmatpush1.msra.mxu0 %v212
    %214 = vmatprep.subr.mxu0 0.0
    %v215 = vand.u32 %v24, 4294901760
    %v216 = vsub.f32 %v24, %v215
    %v217 = vand.u32 %v216, 4294901760
    %v218 = vsub.f32 %v216, %v217
    %v219 = vand.u32 %v218, 4294901760
    %220 = vmatpush1.msra.mxu0 %v219
    %221 = vmatprep.subr.mxu0 0.0
    %v222 = vand.u32 %v25, 4294901760
    %v223 = vsub.f32 %v25, %v222
    %v224 = vand.u32 %v223, 4294901760
    %v225 = vsub.f32 %v223, %v224
    %v226 = vand.u32 %v225, 4294901760
    %227 = vmatpush1.msra.mxu0 %v226
    %228 = vmatprep.subr.mxu0 0.0
    %v229 = vand.u32 %v26, 4294901760
    %v230 = vsub.f32 %v26, %v229
    %v231 = vand.u32 %v230, 4294901760
    %v232 = vsub.f32 %v230, %v231
    %v233 = vand.u32 %v232, 4294901760
    %234 = vmatpush1.msra.mxu0 %v233
    %235 = vmatprep.subr.mxu0 0.0
    %v236 = vand.u32 %v27, 4294901760
    %v237 = vsub.f32 %v27, %v236
    %v238 = vand.u32 %v237, 4294901760
    %v239 = vsub.f32 %v237, %v238
    %v240 = vand.u32 %v239, 4294901760
    %241 = vmatpush1.msra.mxu0 %v240
    %242 = vmatprep.subr.mxu0 0.0
    %v243 = vand.u32 %v28, 4294901760
    %v244 = vsub.f32 %v28, %v243
    %v245 = vand.u32 %v244, 4294901760
    %v246 = vsub.f32 %v244, %v245
    %v247 = vand.u32 %v246, 4294901760
    %248 = vmatpush1.msra.mxu0 %v247
    %249 = vmatprep.subr.mxu0 0.0
    %v250 = vand.u32 %v29, 4294901760
    %v251 = vsub.f32 %v29, %v250
    %v252 = vand.u32 %v251, 4294901760
    %v253 = vsub.f32 %v251, %v252
    %v254 = vand.u32 %v253, 4294901760
    %255 = vmatpush1.msra.mxu0 %v254
    %256 = vmatprep.subr.mxu0 0.0
    %v257 = vand.u32 %v30, 4294901760
    %v258 = vsub.f32 %v30, %v257
    %v259 = vand.u32 %v258, 4294901760
    %v260 = vsub.f32 %v258, %v259
    %v261 = vand.u32 %v260, 4294901760
    %262 = vmatpush1.msra.mxu0 %v261
    %263 = vmatprep.subr.mxu0 0.0
    %v264 = vand.u32 %v31, 4294901760
    %v265 = vsub.f32 %v31, %v264
    %v266 = vand.u32 %v265, 4294901760
    %v267 = vsub.f32 %v265, %v266
    %v268 = vand.u32 %v267, 4294901760
    %269 = vmatpush1.msra.mxu0 %v268
    %270 = vmatprep.subr.mxu0 0.0
    %v271 = vand.u32 %v32, 4294901760
    %v272 = vsub.f32 %v32, %v271
    %v273 = vand.u32 %v272, 4294901760
    %v274 = vsub.f32 %v272, %v273
    %v275 = vand.u32 %v274, 4294901760
    %276 = vmatpush1.msra.mxu0 %v275
    %277 = vmatprep.subr.mxu0 0.0
    %v278 = vand.u32 %v33, 4294901760
    %v279 = vsub.f32 %v33, %v278
    %v280 = vand.u32 %v279, 4294901760
    %v281 = vsub.f32 %v279, %v280
    %v282 = vand.u32 %v281, 4294901760
    %283 = vmatpush1.msra.mxu0 %v282
    %284 = vmatprep.subr.mxu0 0.0
    %v285 = vand.u32 %v34, 4294901760
    %v286 = vsub.f32 %v34, %v285
    %v287 = vand.u32 %v286, 4294901760
    %v288 = vsub.f32 %v286, %v287
    %v289 = vand.u32 %v288, 4294901760
    %290 = vmatpush1.msra.mxu0 %v289
    %291 = vmatprep.subr.mxu0 0.0
    %v292 = vand.u32 %v35, 4294901760
    %v293 = vsub.f32 %v35, %v292
    %v294 = vand.u32 %v293, 4294901760
    %v295 = vsub.f32 %v293, %v294
    %v296 = vand.u32 %v295, 4294901760
    %297 = vmatpush1.msra.mxu0 %v296
    %298 = vmatprep.subr.mxu0 0.0
    %v299 = vand.u32 %v36, 4294901760
    %v300 = vsub.f32 %v36, %v299
    %v301 = vand.u32 %v300, 4294901760
    %v302 = vsub.f32 %v300, %v301
    %v303 = vand.u32 %v302, 4294901760
    %304 = vmatpush1.msra.mxu0 %v303
    %305 = vmatprep.subr.mxu0 0.0
    %v306 = vand.u32 %v37, 4294901760
    %v307 = vsub.f32 %v37, %v306
    %v308 = vand.u32 %v307, 4294901760
    %v309 = vsub.f32 %v307, %v308
    %v310 = vand.u32 %v309, 4294901760
    %311 = vmatpush1.msra.mxu0 %v310
    %312 = vmatprep.subr.mxu0 0.0
    %v313 = vand.u32 %v38, 4294901760
    %v314 = vsub.f32 %v38, %v313
    %v315 = vand.u32 %v314, 4294901760
    %v316 = vsub.f32 %v314, %v315
    %v317 = vand.u32 %v316, 4294901760
    %318 = vmatpush1.msra.mxu0 %v317
    %319 = vmatprep.subr.mxu0 0.0
    %v320 = vand.u32 %v39, 4294901760
    %v321 = vsub.f32 %v39, %v320
    %v322 = vand.u32 %v321, 4294901760
    %v323 = vsub.f32 %v321, %v322
    %v324 = vand.u32 %v323, 4294901760
    %325 = vmatpush1.msra.mxu0 %v324
    %326 = vmatprep.subr.mxu0 0.0
    %v327 = vand.u32 %v40, 4294901760
    %v328 = vsub.f32 %v40, %v327
    %v329 = vand.u32 %v328, 4294901760
    %v330 = vsub.f32 %v328, %v329
    %v331 = vand.u32 %v330, 4294901760
    %332 = vmatpush1.msra.mxu0 %v331
    %333 = vmatprep.subr.mxu0 0.0
    %v334 = vand.u32 %v41, 4294901760
    %v335 = vsub.f32 %v41, %v334
    %v336 = vand.u32 %v335, 4294901760
    %v337 = vsub.f32 %v335, %v336
    %v338 = vand.u32 %v337, 4294901760
    %339 = vmatpush1.msra.mxu0 %v338
    %340 = vmatprep.subr.mxu0 0.0
    %v341 = vand.u32 %v42, 4294901760
    %v342 = vsub.f32 %v42, %v341
    %v343 = vand.u32 %v342, 4294901760
    %v344 = vsub.f32 %v342, %v343
    %v345 = vand.u32 %v344, 4294901760
    %346 = vmatpush1.msra.mxu0 %v345
    %347 = vmatprep.subr.mxu0 0.0
    %v348 = vand.u32 %v43, 4294901760
    %v349 = vsub.f32 %v43, %v348
    %v350 = vand.u32 %v349, 4294901760
    %v351 = vsub.f32 %v349, %v350
    %v352 = vand.u32 %v351, 4294901760
    %353 = vmatpush1.msra.mxu0 %v352
    %354 = vmatprep.subr.mxu0 0.0
    %v355 = vand.u32 %v44, 4294901760
    %v356 = vsub.f32 %v44, %v355
    %v357 = vand.u32 %v356, 4294901760
    %v358 = vsub.f32 %v356, %v357
    %v359 = vand.u32 %v358, 4294901760
    %360 = vmatpush1.msra.mxu0 %v359
    %361 = vmatprep.subr.mxu0 0.0
    %v362 = vand.u32 %v45, 4294901760
    %v363 = vsub.f32 %v45, %v362
    %v364 = vand.u32 %v363, 4294901760
    %v365 = vsub.f32 %v363, %v364
    %v366 = vand.u32 %v365, 4294901760
    %367 = vmatpush1.msra.mxu0 %v366
    %368 = vmatprep.subr.mxu0 0.0
    %v369 = vand.u32 %v46, 4294901760
    %v370 = vsub.f32 %v46, %v369
    %v371 = vand.u32 %v370, 4294901760
    %v372 = vsub.f32 %v370, %v371
    %v373 = vand.u32 %v372, 4294901760
    %374 = vmatpush1.msra.mxu0 %v373
    %375 = vmatprep.subr.mxu0 0.0
    %v376 = vand.u32 %v47, 4294901760
    %v377 = vsub.f32 %v47, %v376
    %v378 = vand.u32 %v377, 4294901760
    %v379 = vsub.f32 %v377, %v378
    %v380 = vand.u32 %v379, 4294901760
    %381 = vmatpush1.msra.mxu0 %v380
    %382 = vmatprep.subr.mxu0 0.0
    %v383 = vand.u32 %v48, 4294901760
    %v384 = vsub.f32 %v48, %v383
    %v385 = vand.u32 %v384, 4294901760
    %v386 = vsub.f32 %v384, %v385
    %v387 = vand.u32 %v386, 4294901760
    %388 = vmatpush1.msra.mxu0 %v387
    %v389 = vand.u32 %v51, 4294901760
    %390 = vmatprep.mubr.f32.mxu0 %v389
    %v391 = vand.u32 %v49, 4294901760
    %392 = vmatmul.mubr.f32.gmra.mrb[0].mxu0 %v391
    %v393 = vpop.f32.mrb[0].mxu0
    %v394 = vadd.f32 %v162, %v393
    %v395 = vpop.f32.mrb[0].mxu0
    %396 = vdwg.mxu0
    %397 = vmatprep.subr.mxu0 0.0
    %v398 = vand.u32 %v17, 4294901760
    %v399 = vsub.f32 %v17, %v398
    %400 = vmatpush1.msra.mxu0 %v399
    %401 = vmatprep.subr.mxu0 0.0
    %v402 = vand.u32 %v18, 4294901760
    %v403 = vsub.f32 %v18, %v402
    %404 = vmatpush1.msra.mxu0 %v403
    %405 = vmatprep.subr.mxu0 0.0
    %v406 = vand.u32 %v19, 4294901760
    %v407 = vsub.f32 %v19, %v406
    %408 = vmatpush1.msra.mxu0 %v407
    %409 = vmatprep.subr.mxu0 0.0
    %v410 = vand.u32 %v20, 4294901760
    %v411 = vsub.f32 %v20, %v410
    %412 = vmatpush1.msra.mxu0 %v411
    %413 = vmatprep.subr.mxu0 0.0
    %v414 = vand.u32 %v21, 4294901760
    %v415 = vsub.f32 %v21, %v414
    %416 = vmatpush1.msra.mxu0 %v415
    %417 = vmatprep.subr.mxu0 0.0
    %v418 = vand.u32 %v22, 4294901760
    %v419 = vsub.f32 %v22, %v418
    %420 = vmatpush1.msra.mxu0 %v419
    %421 = vmatprep.subr.mxu0 0.0
    %v422 = vand.u32 %v23, 4294901760
    %v423 = vsub.f32 %v23, %v422
    %424 = vmatpush1.msra.mxu0 %v423
    %425 = vmatprep.subr.mxu0 0.0
    %v426 = vand.u32 %v24, 4294901760
    %v427 = vsub.f32 %v24, %v426
    %428 = vmatpush1.msra.mxu0 %v427
    %429 = vmatprep.subr.mxu0 0.0
    %v430 = vand.u32 %v25, 4294901760
    %v431 = vsub.f32 %v25, %v430
    %432 = vmatpush1.msra.mxu0 %v431
    %433 = vmatprep.subr.mxu0 0.0
    %v434 = vand.u32 %v26, 4294901760
    %v435 = vsub.f32 %v26, %v434
    %436 = vmatpush1.msra.mxu0 %v435
    %437 = vmatprep.subr.mxu0 0.0
    %v438 = vand.u32 %v27, 4294901760
    %v439 = vsub.f32 %v27, %v438
    %440 = vmatpush1.msra.mxu0 %v439
    %441 = vmatprep.subr.mxu0 0.0
    %v442 = vand.u32 %v28, 4294901760
    %v443 = vsub.f32 %v28, %v442
    %444 = vmatpush1.msra.mxu0 %v443
    %445 = vmatprep.subr.mxu0 0.0
    %v446 = vand.u32 %v29, 4294901760
    %v447 = vsub.f32 %v29, %v446
    %448 = vmatpush1.msra.mxu0 %v447
    %449 = vmatprep.subr.mxu0 0.0
    %v450 = vand.u32 %v30, 4294901760
    %v451 = vsub.f32 %v30, %v450
    %452 = vmatpush1.msra.mxu0 %v451
    %453 = vmatprep.subr.mxu0 0.0
    %v454 = vand.u32 %v31, 4294901760
    %v455 = vsub.f32 %v31, %v454
    %456 = vmatpush1.msra.mxu0 %v455
    %457 = vmatprep.subr.mxu0 0.0
    %v458 = vand.u32 %v32, 4294901760
    %v459 = vsub.f32 %v32, %v458
    %460 = vmatpush1.msra.mxu0 %v459
    %461 = vmatprep.subr.mxu0 0.0
    %v462 = vand.u32 %v33, 4294901760
    %v463 = vsub.f32 %v33, %v462
    %464 = vmatpush1.msra.mxu0 %v463
    %465 = vmatprep.subr.mxu0 0.0
    %v466 = vand.u32 %v34, 4294901760
    %v467 = vsub.f32 %v34, %v466
    %468 = vmatpush1.msra.mxu0 %v467
    %469 = vmatprep.subr.mxu0 0.0
    %v470 = vand.u32 %v35, 4294901760
    %v471 = vsub.f32 %v35, %v470
    %472 = vmatpush1.msra.mxu0 %v471
    %473 = vmatprep.subr.mxu0 0.0
    %v474 = vand.u32 %v36, 4294901760
    %v475 = vsub.f32 %v36, %v474
    %476 = vmatpush1.msra.mxu0 %v475
    %477 = vmatprep.subr.mxu0 0.0
    %v478 = vand.u32 %v37, 4294901760
    %v479 = vsub.f32 %v37, %v478
    %480 = vmatpush1.msra.mxu0 %v479
    %481 = vmatprep.subr.mxu0 0.0
    %v482 = vand.u32 %v38, 4294901760
    %v483 = vsub.f32 %v38, %v482
    %484 = vmatpush1.msra.mxu0 %v483
    %485 = vmatprep.subr.mxu0 0.0
    %v486 = vand.u32 %v39, 4294901760
    %v487 = vsub.f32 %v39, %v486
    %488 = vmatpush1.msra.mxu0 %v487
    %489 = vmatprep.subr.mxu0 0.0
    %v490 = vand.u32 %v40, 4294901760
    %v491 = vsub.f32 %v40, %v490
    %492 = vmatpush1.msra.mxu0 %v491
    %493 = vmatprep.subr.mxu0 0.0
    %v494 = vand.u32 %v41, 4294901760
    %v495 = vsub.f32 %v41, %v494
    %496 = vmatpush1.msra.mxu0 %v495
    %497 = vmatprep.subr.mxu0 0.0
    %v498 = vand.u32 %v42, 4294901760
    %v499 = vsub.f32 %v42, %v498
    %500 = vmatpush1.msra.mxu0 %v499
    %501 = vmatprep.subr.mxu0 0.0
    %v502 = vand.u32 %v43, 4294901760
    %v503 = vsub.f32 %v43, %v502
    %504 = vmatpush1.msra.mxu0 %v503
    %505 = vmatprep.subr.mxu0 0.0
    %v506 = vand.u32 %v44, 4294901760
    %v507 = vsub.f32 %v44, %v506
    %508 = vmatpush1.msra.mxu0 %v507
    %509 = vmatprep.subr.mxu0 0.0
    %v510 = vand.u32 %v45, 4294901760
    %v511 = vsub.f32 %v45, %v510
    %512 = vmatpush1.msra.mxu0 %v511
    %513 = vmatprep.subr.mxu0 0.0
    %v514 = vand.u32 %v46, 4294901760
    %v515 = vsub.f32 %v46, %v514
    %516 = vmatpush1.msra.mxu0 %v515
    %517 = vmatprep.subr.mxu0 0.0
    %v518 = vand.u32 %v47, 4294901760
    %v519 = vsub.f32 %v47, %v518
    %520 = vmatpush1.msra.mxu0 %v519
    %521 = vmatprep.subr.mxu0 0.0
    %v522 = vand.u32 %v48, 4294901760
    %v523 = vsub.f32 %v48, %v522
    %524 = vmatpush1.msra.mxu0 %v523
    %v525 = vand.u32 %v51, 4294901760
    %v526 = vsub.f32 %v51, %v525
    %527 = vmatprep.mubr.f32.mxu0 %v526
    %v528 = vand.u32 %v49, 4294901760
    %v529 = vsub.f32 %v49, %v528
    %530 = vmatmul.mubr.f32.gmra.mrb[0].mxu0 %v529
    %v531 = vpop.f32.mrb[0].mxu0
    %v532 = vadd.f32 %v394, %v531
    %v533 = vpop.f32.mrb[0].mxu0
    %534 = vdwg.mxu0
    %535 = vmatprep.subr.mxu0 0.0
    %v536 = vand.u32 %v17, 4294901760
    %537 = vmatpush1.msra.mxu0 %v536
    %538 = vmatprep.subr.mxu0 0.0
    %v539 = vand.u32 %v18, 4294901760
    %540 = vmatpush1.msra.mxu0 %v539
    %541 = vmatprep.subr.mxu0 0.0
    %v542 = vand.u32 %v19, 4294901760
    %543 = vmatpush1.msra.mxu0 %v542
    %544 = vmatprep.subr.mxu0 0.0
    %v545 = vand.u32 %v20, 4294901760
    %546 = vmatpush1.msra.mxu0 %v545
    %547 = vmatprep.subr.mxu0 0.0
    %v548 = vand.u32 %v21, 4294901760
    %549 = vmatpush1.msra.mxu0 %v548
    %550 = vmatprep.subr.mxu0 0.0
    %v551 = vand.u32 %v22, 4294901760
    %552 = vmatpush1.msra.mxu0 %v551
    %553 = vmatprep.subr.mxu0 0.0
    %v554 = vand.u32 %v23, 4294901760
    %555 = vmatpush1.msra.mxu0 %v554
    %556 = vmatprep.subr.mxu0 0.0
    %v557 = vand.u32 %v24, 4294901760
    %558 = vmatpush1.msra.mxu0 %v557
    %559 = vmatprep.subr.mxu0 0.0
    %v560 = vand.u32 %v25, 4294901760
    %561 = vmatpush1.msra.mxu0 %v560
    %562 = vmatprep.subr.mxu0 0.0
    %v563 = vand.u32 %v26, 4294901760
    %564 = vmatpush1.msra.mxu0 %v563
    %565 = vmatprep.subr.mxu0 0.0
    %v566 = vand.u32 %v27, 4294901760
    %567 = vmatpush1.msra.mxu0 %v566
    %568 = vmatprep.subr.mxu0 0.0
    %v569 = vand.u32 %v28, 4294901760
    %570 = vmatpush1.msra.mxu0 %v569
    %571 = vmatprep.subr.mxu0 0.0
    %v572 = vand.u32 %v29, 4294901760
    %573 = vmatpush1.msra.mxu0 %v572
    %574 = vmatprep.subr.mxu0 0.0
    %v575 = vand.u32 %v30, 4294901760
    %576 = vmatpush1.msra.mxu0 %v575
    %577 = vmatprep.subr.mxu0 0.0
    %v578 = vand.u32 %v31, 4294901760
    %579 = vmatpush1.msra.mxu0 %v578
    %580 = vmatprep.subr.mxu0 0.0
    %v581 = vand.u32 %v32, 4294901760
    %582 = vmatpush1.msra.mxu0 %v581
    %583 = vmatprep.subr.mxu0 0.0
    %v584 = vand.u32 %v33, 4294901760
    %585 = vmatpush1.msra.mxu0 %v584
    %586 = vmatprep.subr.mxu0 0.0
    %v587 = vand.u32 %v34, 4294901760
    %588 = vmatpush1.msra.mxu0 %v587
    %589 = vmatprep.subr.mxu0 0.0
    %v590 = vand.u32 %v35, 4294901760
    %591 = vmatpush1.msra.mxu0 %v590
    %592 = vmatprep.subr.mxu0 0.0
    %v593 = vand.u32 %v36, 4294901760
    %594 = vmatpush1.msra.mxu0 %v593
    %595 = vmatprep.subr.mxu0 0.0
    %v596 = vand.u32 %v37, 4294901760
    %597 = vmatpush1.msra.mxu0 %v596
    %598 = vmatprep.subr.mxu0 0.0
    %v599 = vand.u32 %v38, 4294901760
    %600 = vmatpush1.msra.mxu0 %v599
    %601 = vmatprep.subr.mxu0 0.0
    %v602 = vand.u32 %v39, 4294901760
    %603 = vmatpush1.msra.mxu0 %v602
    %604 = vmatprep.subr.mxu0 0.0
    %v605 = vand.u32 %v40, 4294901760
    %606 = vmatpush1.msra.mxu0 %v605
    %607 = vmatprep.subr.mxu0 0.0
    %v608 = vand.u32 %v41, 4294901760
    %609 = vmatpush1.msra.mxu0 %v608
    %610 = vmatprep.subr.mxu0 0.0
    %v611 = vand.u32 %v42, 4294901760
    %612 = vmatpush1.msra.mxu0 %v611
    %613 = vmatprep.subr.mxu0 0.0
    %v614 = vand.u32 %v43, 4294901760
    %615 = vmatpush1.msra.mxu0 %v614
    %616 = vmatprep.subr.mxu0 0.0
    %v617 = vand.u32 %v44, 4294901760
    %618 = vmatpush1.msra.mxu0 %v617
    %619 = vmatprep.subr.mxu0 0.0
    %v620 = vand.u32 %v45, 4294901760
    %621 = vmatpush1.msra.mxu0 %v620
    %622 = vmatprep.subr.mxu0 0.0
    %v623 = vand.u32 %v46, 4294901760
    %624 = vmatpush1.msra.mxu0 %v623
    %625 = vmatprep.subr.mxu0 0.0
    %v626 = vand.u32 %v47, 4294901760
    %627 = vmatpush1.msra.mxu0 %v626
    %628 = vmatprep.subr.mxu0 0.0
    %v629 = vand.u32 %v48, 4294901760
    %630 = vmatpush1.msra.mxu0 %v629
    %v631 = vand.u32 %v51, 4294901760
    %v632 = vsub.f32 %v51, %v631
    %v633 = vand.u32 %v632, 4294901760
    %634 = vmatprep.mubr.f32.mxu0 %v633
    %v635 = vand.u32 %v49, 4294901760
    %v636 = vsub.f32 %v49, %v635
    %v637 = vand.u32 %v636, 4294901760
    %638 = vmatmul.mubr.f32.gmra.mrb[0].mxu0 %v637
    %v639 = vpop.f32.mrb[0].mxu0
    %v640 = vadd.f32 %v532, %v639
    %v641 = vpop.f32.mrb[0].mxu0
    %642 = vdwg.mxu0
    %643 = vmatprep.subr.mxu0 0.0
    %v644 = vand.u32 %v17, 4294901760
    %v645 = vsub.f32 %v17, %v644
    %v646 = vand.u32 %v645, 4294901760
    %647 = vmatpush1.msra.mxu0 %v646
    %648 = vmatprep.subr.mxu0 0.0
    %v649 = vand.u32 %v18, 4294901760
    %v650 = vsub.f32 %v18, %v649
    %v651 = vand.u32 %v650, 4294901760
    %652 = vmatpush1.msra.mxu0 %v651
    %653 = vmatprep.subr.mxu0 0.0
    %v654 = vand.u32 %v19, 4294901760
    %v655 = vsub.f32 %v19, %v654
    %v656 = vand.u32 %v655, 4294901760
    %657 = vmatpush1.msra.mxu0 %v656
    %658 = vmatprep.subr.mxu0 0.0
    %v659 = vand.u32 %v20, 4294901760
    %v660 = vsub.f32 %v20, %v659
    %v661 = vand.u32 %v660, 4294901760
    %662 = vmatpush1.msra.mxu0 %v661
    %663 = vmatprep.subr.mxu0 0.0
    %v664 = vand.u32 %v21, 4294901760
    %v665 = vsub.f32 %v21, %v664
    %v666 = vand.u32 %v665, 4294901760
    %667 = vmatpush1.msra.mxu0 %v666
    %668 = vmatprep.subr.mxu0 0.0
    %v669 = vand.u32 %v22, 4294901760
    %v670 = vsub.f32 %v22, %v669
    %v671 = vand.u32 %v670, 4294901760
    %672 = vmatpush1.msra.mxu0 %v671
    %673 = vmatprep.subr.mxu0 0.0
    %v674 = vand.u32 %v23, 4294901760
    %v675 = vsub.f32 %v23, %v674
    %v676 = vand.u32 %v675, 4294901760
    %677 = vmatpush1.msra.mxu0 %v676
    %678 = vmatprep.subr.mxu0 0.0
    %v679 = vand.u32 %v24, 4294901760
    %v680 = vsub.f32 %v24, %v679
    %v681 = vand.u32 %v680, 4294901760
    %682 = vmatpush1.msra.mxu0 %v681
    %683 = vmatprep.subr.mxu0 0.0
    %v684 = vand.u32 %v25, 4294901760
    %v685 = vsub.f32 %v25, %v684
    %v686 = vand.u32 %v685, 4294901760
    %687 = vmatpush1.msra.mxu0 %v686
    %688 = vmatprep.subr.mxu0 0.0
    %v689 = vand.u32 %v26, 4294901760
    %v690 = vsub.f32 %v26, %v689
    %v691 = vand.u32 %v690, 4294901760
    %692 = vmatpush1.msra.mxu0 %v691
    %693 = vmatprep.subr.mxu0 0.0
    %v694 = vand.u32 %v27, 4294901760
    %v695 = vsub.f32 %v27, %v694
    %v696 = vand.u32 %v695, 4294901760
    %697 = vmatpush1.msra.mxu0 %v696
    %698 = vmatprep.subr.mxu0 0.0
    %v699 = vand.u32 %v28, 4294901760
    %v700 = vsub.f32 %v28, %v699
    %v701 = vand.u32 %v700, 4294901760
    %702 = vmatpush1.msra.mxu0 %v701
    %703 = vmatprep.subr.mxu0 0.0
    %v704 = vand.u32 %v29, 4294901760
    %v705 = vsub.f32 %v29, %v704
    %v706 = vand.u32 %v705, 4294901760
    %707 = vmatpush1.msra.mxu0 %v706
    %708 = vmatprep.subr.mxu0 0.0
    %v709 = vand.u32 %v30, 4294901760
    %v710 = vsub.f32 %v30, %v709
    %v711 = vand.u32 %v710, 4294901760
    %712 = vmatpush1.msra.mxu0 %v711
    %713 = vmatprep.subr.mxu0 0.0
    %v714 = vand.u32 %v31, 4294901760
    %v715 = vsub.f32 %v31, %v714
    %v716 = vand.u32 %v715, 4294901760
    %717 = vmatpush1.msra.mxu0 %v716
    %718 = vmatprep.subr.mxu0 0.0
    %v719 = vand.u32 %v32, 4294901760
    %v720 = vsub.f32 %v32, %v719
    %v721 = vand.u32 %v720, 4294901760
    %722 = vmatpush1.msra.mxu0 %v721
    %723 = vmatprep.subr.mxu0 0.0
    %v724 = vand.u32 %v33, 4294901760
    %v725 = vsub.f32 %v33, %v724
    %v726 = vand.u32 %v725, 4294901760
    %727 = vmatpush1.msra.mxu0 %v726
    %728 = vmatprep.subr.mxu0 0.0
    %v729 = vand.u32 %v34, 4294901760
    %v730 = vsub.f32 %v34, %v729
    %v731 = vand.u32 %v730, 4294901760
    %732 = vmatpush1.msra.mxu0 %v731
    %733 = vmatprep.subr.mxu0 0.0
    %v734 = vand.u32 %v35, 4294901760
    %v735 = vsub.f32 %v35, %v734
    %v736 = vand.u32 %v735, 4294901760
    %737 = vmatpush1.msra.mxu0 %v736
    %738 = vmatprep.subr.mxu0 0.0
    %v739 = vand.u32 %v36, 4294901760
    %v740 = vsub.f32 %v36, %v739
    %v741 = vand.u32 %v740, 4294901760
    %742 = vmatpush1.msra.mxu0 %v741
    %743 = vmatprep.subr.mxu0 0.0
    %v744 = vand.u32 %v37, 4294901760
    %v745 = vsub.f32 %v37, %v744
    %v746 = vand.u32 %v745, 4294901760
    %747 = vmatpush1.msra.mxu0 %v746
    %748 = vmatprep.subr.mxu0 0.0
    %v749 = vand.u32 %v38, 4294901760
    %v750 = vsub.f32 %v38, %v749
    %v751 = vand.u32 %v750, 4294901760
    %752 = vmatpush1.msra.mxu0 %v751
    %753 = vmatprep.subr.mxu0 0.0
    %v754 = vand.u32 %v39, 4294901760
    %v755 = vsub.f32 %v39, %v754
    %v756 = vand.u32 %v755, 4294901760
    %757 = vmatpush1.msra.mxu0 %v756
    %758 = vmatprep.subr.mxu0 0.0
    %v759 = vand.u32 %v40, 4294901760
    %v760 = vsub.f32 %v40, %v759
    %v761 = vand.u32 %v760, 4294901760
    %762 = vmatpush1.msra.mxu0 %v761
    %763 = vmatprep.subr.mxu0 0.0
    %v764 = vand.u32 %v41, 4294901760
    %v765 = vsub.f32 %v41, %v764
    %v766 = vand.u32 %v765, 4294901760
    %767 = vmatpush1.msra.mxu0 %v766
    %768 = vmatprep.subr.mxu0 0.0
    %v769 = vand.u32 %v42, 4294901760
    %v770 = vsub.f32 %v42, %v769
    %v771 = vand.u32 %v770, 4294901760
    %772 = vmatpush1.msra.mxu0 %v771
    %773 = vmatprep.subr.mxu0 0.0
    %v774 = vand.u32 %v43, 4294901760
    %v775 = vsub.f32 %v43, %v774
    %v776 = vand.u32 %v775, 4294901760
    %777 = vmatpush1.msra.mxu0 %v776
    %778 = vmatprep.subr.mxu0 0.0
    %v779 = vand.u32 %v44, 4294901760
    %v780 = vsub.f32 %v44, %v779
    %v781 = vand.u32 %v780, 4294901760
    %782 = vmatpush1.msra.mxu0 %v781
    %783 = vmatprep.subr.mxu0 0.0
    %v784 = vand.u32 %v45, 4294901760
    %v785 = vsub.f32 %v45, %v784
    %v786 = vand.u32 %v785, 4294901760
    %787 = vmatpush1.msra.mxu0 %v786
    %788 = vmatprep.subr.mxu0 0.0
    %v789 = vand.u32 %v46, 4294901760
    %v790 = vsub.f32 %v46, %v789
    %v791 = vand.u32 %v790, 4294901760
    %792 = vmatpush1.msra.mxu0 %v791
    %793 = vmatprep.subr.mxu0 0.0
    %v794 = vand.u32 %v47, 4294901760
    %v795 = vsub.f32 %v47, %v794
    %v796 = vand.u32 %v795, 4294901760
    %797 = vmatpush1.msra.mxu0 %v796
    %798 = vmatprep.subr.mxu0 0.0
    %v799 = vand.u32 %v48, 4294901760
    %v800 = vsub.f32 %v48, %v799
    %v801 = vand.u32 %v800, 4294901760
    %802 = vmatpush1.msra.mxu0 %v801
    %v803 = vand.u32 %v51, 4294901760
    %804 = vmatprep.mubr.f32.mxu0 %v803
    %v805 = vand.u32 %v49, 4294901760
    %806 = vmatmul.mubr.f32.gmra.mrb[0].mxu0 %v805
    %v807 = vpop.f32.mrb[0].mxu0
    %v808 = vadd.f32 %v640, %v807
    %v809 = vpop.f32.mrb[0].mxu0
    %810 = vdwg.mxu0
    %811 = vmatprep.subr.mxu0 0.0
    %v812 = vand.u32 %v17, 4294901760
    %813 = vmatpush1.msra.mxu0 %v812
    %814 = vmatprep.subr.mxu0 0.0
    %v815 = vand.u32 %v18, 4294901760
    %816 = vmatpush1.msra.mxu0 %v815
    %817 = vmatprep.subr.mxu0 0.0
    %v818 = vand.u32 %v19, 4294901760
    %819 = vmatpush1.msra.mxu0 %v818
    %820 = vmatprep.subr.mxu0 0.0
    %v821 = vand.u32 %v20, 4294901760
    %822 = vmatpush1.msra.mxu0 %v821
    %823 = vmatprep.subr.mxu0 0.0
    %v824 = vand.u32 %v21, 4294901760
    %825 = vmatpush1.msra.mxu0 %v824
    %826 = vmatprep.subr.mxu0 0.0
    %v827 = vand.u32 %v22, 4294901760
    %828 = vmatpush1.msra.mxu0 %v827
    %829 = vmatprep.subr.mxu0 0.0
    %v830 = vand.u32 %v23, 4294901760
    %831 = vmatpush1.msra.mxu0 %v830
    %832 = vmatprep.subr.mxu0 0.0
    %v833 = vand.u32 %v24, 4294901760
    %834 = vmatpush1.msra.mxu0 %v833
    %835 = vmatprep.subr.mxu0 0.0
    %v836 = vand.u32 %v25, 4294901760
    %837 = vmatpush1.msra.mxu0 %v836
    %838 = vmatprep.subr.mxu0 0.0
    %v839 = vand.u32 %v26, 4294901760
    %840 = vmatpush1.msra.mxu0 %v839
    %841 = vmatprep.subr.mxu0 0.0
    %v842 = vand.u32 %v27, 4294901760
    %843 = vmatpush1.msra.mxu0 %v842
    %844 = vmatprep.subr.mxu0 0.0
    %v845 = vand.u32 %v28, 4294901760
    %846 = vmatpush1.msra.mxu0 %v845
    %847 = vmatprep.subr.mxu0 0.0
    %v848 = vand.u32 %v29, 4294901760
    %849 = vmatpush1.msra.mxu0 %v848
    %850 = vmatprep.subr.mxu0 0.0
    %v851 = vand.u32 %v30, 4294901760
    %852 = vmatpush1.msra.mxu0 %v851
    %853 = vmatprep.subr.mxu0 0.0
    %v854 = vand.u32 %v31, 4294901760
    %855 = vmatpush1.msra.mxu0 %v854
    %856 = vmatprep.subr.mxu0 0.0
    %v857 = vand.u32 %v32, 4294901760
    %858 = vmatpush1.msra.mxu0 %v857
    %859 = vmatprep.subr.mxu0 0.0
    %v860 = vand.u32 %v33, 4294901760
    %861 = vmatpush1.msra.mxu0 %v860
    %862 = vmatprep.subr.mxu0 0.0
    %v863 = vand.u32 %v34, 4294901760
    %864 = vmatpush1.msra.mxu0 %v863
    %865 = vmatprep.subr.mxu0 0.0
    %v866 = vand.u32 %v35, 4294901760
    %867 = vmatpush1.msra.mxu0 %v866
    %868 = vmatprep.subr.mxu0 0.0
    %v869 = vand.u32 %v36, 4294901760
    %870 = vmatpush1.msra.mxu0 %v869
    %871 = vmatprep.subr.mxu0 0.0
    %v872 = vand.u32 %v37, 4294901760
    %873 = vmatpush1.msra.mxu0 %v872
    %874 = vmatprep.subr.mxu0 0.0
    %v875 = vand.u32 %v38, 4294901760
    %876 = vmatpush1.msra.mxu0 %v875
    %877 = vmatprep.subr.mxu0 0.0
    %v878 = vand.u32 %v39, 4294901760
    %879 = vmatpush1.msra.mxu0 %v878
    %880 = vmatprep.subr.mxu0 0.0
    %v881 = vand.u32 %v40, 4294901760
    %882 = vmatpush1.msra.mxu0 %v881
    %883 = vmatprep.subr.mxu0 0.0
    %v884 = vand.u32 %v41, 4294901760
    %885 = vmatpush1.msra.mxu0 %v884
    %886 = vmatprep.subr.mxu0 0.0
    %v887 = vand.u32 %v42, 4294901760
    %888 = vmatpush1.msra.mxu0 %v887
    %889 = vmatprep.subr.mxu0 0.0
    %v890 = vand.u32 %v43, 4294901760
    %891 = vmatpush1.msra.mxu0 %v890
    %892 = vmatprep.subr.mxu0 0.0
    %v893 = vand.u32 %v44, 4294901760
    %894 = vmatpush1.msra.mxu0 %v893
    %895 = vmatprep.subr.mxu0 0.0
    %v896 = vand.u32 %v45, 4294901760
    %897 = vmatpush1.msra.mxu0 %v896
    %898 = vmatprep.subr.mxu0 0.0
    %v899 = vand.u32 %v46, 4294901760
    %900 = vmatpush1.msra.mxu0 %v899
    %901 = vmatprep.subr.mxu0 0.0
    %v902 = vand.u32 %v47, 4294901760
    %903 = vmatpush1.msra.mxu0 %v902
    %904 = vmatprep.subr.mxu0 0.0
    %v905 = vand.u32 %v48, 4294901760
    %906 = vmatpush1.msra.mxu0 %v905
    %v907 = vand.u32 %v51, 4294901760
    %908 = vmatprep.mubr.f32.mxu0 %v907
    %v909 = vand.u32 %v49, 4294901760
    %910 = vmatmul.mubr.f32.gmra.mrb[0].mxu0 %v909
    %v911 = vpop.f32.mrb[0].mxu0
    %v912 = vadd.f32 %v808, %v911
    %v913 = vpop.f32.mrb[0].mxu0
    %914 = vdwg.mxu0
    %vm915 = vcmask 519168
    %916 = vst.msk [vmem:[#allocation2 + $0x2] sm:$0xf] %vm915, %v912
    %s917 = scalar_lea.vmem %s0, 8
    %v918 = vld [vmem:[%s917] sm:$0xff]
    %v920 = vcombine.high %v918, %v918
    %922 = vmatprep.subr.mxu0 0.0
    %v923 = vand.u32 %v17, 4294901760
    %924 = vmatpush1.msra.mxu0 %v923
    %925 = vmatprep.subr.mxu0 0.0
    %v926 = vand.u32 %v18, 4294901760
    %927 = vmatpush1.msra.mxu0 %v926
    %928 = vmatprep.subr.mxu0 0.0
    %v929 = vand.u32 %v19, 4294901760
    %930 = vmatpush1.msra.mxu0 %v929
    %931 = vmatprep.subr.mxu0 0.0
    %v932 = vand.u32 %v20, 4294901760
    %933 = vmatpush1.msra.mxu0 %v932
    %934 = vmatprep.subr.mxu0 0.0
    %v935 = vand.u32 %v21, 4294901760
    %936 = vmatpush1.msra.mxu0 %v935
    %937 = vmatprep.subr.mxu0 0.0
    %v938 = vand.u32 %v22, 4294901760
    %939 = vmatpush1.msra.mxu0 %v938
    %940 = vmatprep.subr.mxu0 0.0
    %v941 = vand.u32 %v23, 4294901760
    %942 = vmatpush1.msra.mxu0 %v941
    %943 = vmatprep.subr.mxu0 0.0
    %v944 = vand.u32 %v24, 4294901760
    %945 = vmatpush1.msra.mxu0 %v944
    %946 = vmatprep.subr.mxu0 0.0
    %v947 = vand.u32 %v25, 4294901760
    %948 = vmatpush1.msra.mxu0 %v947
    %949 = vmatprep.subr.mxu0 0.0
    %v950 = vand.u32 %v26, 4294901760
    %951 = vmatpush1.msra.mxu0 %v950
    %952 = vmatprep.subr.mxu0 0.0
    %v953 = vand.u32 %v27, 4294901760
    %954 = vmatpush1.msra.mxu0 %v953
    %955 = vmatprep.subr.mxu0 0.0
    %v956 = vand.u32 %v28, 4294901760
    %957 = vmatpush1.msra.mxu0 %v956
    %958 = vmatprep.subr.mxu0 0.0
    %v959 = vand.u32 %v29, 4294901760
    %960 = vmatpush1.msra.mxu0 %v959
    %961 = vmatprep.subr.mxu0 0.0
    %v962 = vand.u32 %v30, 4294901760
    %963 = vmatpush1.msra.mxu0 %v962
    %964 = vmatprep.subr.mxu0 0.0
    %v965 = vand.u32 %v31, 4294901760
    %966 = vmatpush1.msra.mxu0 %v965
    %967 = vmatprep.subr.mxu0 0.0
    %v968 = vand.u32 %v32, 4294901760
    %969 = vmatpush1.msra.mxu0 %v968
    %970 = vmatprep.subr.mxu0 0.0
    %v971 = vand.u32 %v33, 4294901760
    %972 = vmatpush1.msra.mxu0 %v971
    %973 = vmatprep.subr.mxu0 0.0
    %v974 = vand.u32 %v34, 4294901760
    %975 = vmatpush1.msra.mxu0 %v974
    %976 = vmatprep.subr.mxu0 0.0
    %v977 = vand.u32 %v35, 4294901760
    %978 = vmatpush1.msra.mxu0 %v977
    %979 = vmatprep.subr.mxu0 0.0
    %v980 = vand.u32 %v36, 4294901760
    %981 = vmatpush1.msra.mxu0 %v980
    %982 = vmatprep.subr.mxu0 0.0
    %v983 = vand.u32 %v37, 4294901760
    %984 = vmatpush1.msra.mxu0 %v983
    %985 = vmatprep.subr.mxu0 0.0
    %v986 = vand.u32 %v38, 4294901760
    %987 = vmatpush1.msra.mxu0 %v986
    %988 = vmatprep.subr.mxu0 0.0
    %v989 = vand.u32 %v39, 4294901760
    %990 = vmatpush1.msra.mxu0 %v989
    %991 = vmatprep.subr.mxu0 0.0
    %v992 = vand.u32 %v40, 4294901760
    %993 = vmatpush1.msra.mxu0 %v992
    %994 = vmatprep.subr.mxu0 0.0
    %v995 = vand.u32 %v41, 4294901760
    %996 = vmatpush1.msra.mxu0 %v995
    %997 = vmatprep.subr.mxu0 0.0
    %v998 = vand.u32 %v42, 4294901760
    %999 = vmatpush1.msra.mxu0 %v998
    %1000 = vmatprep.subr.mxu0 0.0
    %v1001 = vand.u32 %v43, 4294901760
    %1002 = vmatpush1.msra.mxu0 %v1001
    %1003 = vmatprep.subr.mxu0 0.0
    %v1004 = vand.u32 %v44, 4294901760
    %1005 = vmatpush1.msra.mxu0 %v1004
    %1006 = vmatprep.subr.mxu0 0.0
    %v1007 = vand.u32 %v45, 4294901760
    %1008 = vmatpush1.msra.mxu0 %v1007
    %1009 = vmatprep.subr.mxu0 0.0
    %v1010 = vand.u32 %v46, 4294901760
    %1011 = vmatpush1.msra.mxu0 %v1010
    %1012 = vmatprep.subr.mxu0 0.0
    %v1013 = vand.u32 %v47, 4294901760
    %1014 = vmatpush1.msra.mxu0 %v1013
    %1015 = vmatprep.subr.mxu0 0.0
    %v1016 = vand.u32 %v48, 4294901760
    %1017 = vmatpush1.msra.mxu0 %v1016
    %v1018 = vand.u32 %v920, 4294901760
    %v1019 = vsub.f32 %v920, %v1018
    %v1020 = vand.u32 %v1019, 4294901760
    %v1021 = vsub.f32 %v1019, %v1020
    %v1022 = vand.u32 %v1021, 4294901760
    %1023 = vmatprep.mubr.f32.mxu0 %v1022
    %v1024 = vand.u32 %v918, 4294901760
    %v1025 = vsub.f32 %v918, %v1024
    %v1026 = vand.u32 %v1025, 4294901760
    %v1027 = vsub.f32 %v1025, %v1026
    %v1028 = vand.u32 %v1027, 4294901760
    %1029 = vmatmul.mubr.f32.gmra.mrb[0].mxu0 %v1028
    %v1030 = vpop.f32.mrb[0].mxu0
    %v1031 = vadd.f32 0.0, %v1030
    %v1032 = vpop.f32.mrb[0].mxu0
    %1033 = vdwg.mxu0
    %1034 = vmatprep.subr.mxu0 0.0
    %v1035 = vand.u32 %v17, 4294901760
    %v1036 = vsub.f32 %v17, %v1035
    %v1037 = vand.u32 %v1036, 4294901760
    %v1038 = vsub.f32 %v1036, %v1037
    %v1039 = vand.u32 %v1038, 4294901760
    %1040 = vmatpush1.msra.mxu0 %v1039
    %1041 = vmatprep.subr.mxu0 0.0
    %v1042 = vand.u32 %v18, 4294901760
    %v1043 = vsub.f32 %v18, %v1042
    %v1044 = vand.u32 %v1043, 4294901760
    %v1045 = vsub.f32 %v1043, %v1044
    %v1046 = vand.u32 %v1045, 4294901760
    %1047 = vmatpush1.msra.mxu0 %v1046
    %1048 = vmatprep.subr.mxu0 0.0
    %v1049 = vand.u32 %v19, 4294901760
    %v1050 = vsub.f32 %v19, %v1049
    %v1051 = vand.u32 %v1050, 4294901760
    %v1052 = vsub.f32 %v1050, %v1051
    %v1053 = vand.u32 %v1052, 4294901760
    %1054 = vmatpush1.msra.mxu0 %v1053
    %1055 = vmatprep.subr.mxu0 0.0
    %v1056 = vand.u32 %v20, 4294901760
    %v1057 = vsub.f32 %v20, %v1056
    %v1058 = vand.u32 %v1057, 4294901760
    %v1059 = vsub.f32 %v1057, %v1058
    %v1060 = vand.u32 %v1059, 4294901760
    %1061 = vmatpush1.msra.mxu0 %v1060
    %1062 = vmatprep.subr.mxu0 0.0
    %v1063 = vand.u32 %v21, 4294901760
    %v1064 = vsub.f32 %v21, %v1063
    %v1065 = vand.u32 %v1064, 4294901760
    %v1066 = vsub.f32 %v1064, %v1065
    %v1067 = vand.u32 %v1066, 4294901760
    %1068 = vmatpush1.msra.mxu0 %v1067
    %1069 = vmatprep.subr.mxu0 0.0
    %v1070 = vand.u32 %v22, 4294901760
    %v1071 = vsub.f32 %v22, %v1070
    %v1072 = vand.u32 %v1071, 4294901760
    %v1073 = vsub.f32 %v1071, %v1072
    %v1074 = vand.u32 %v1073, 4294901760
    %1075 = vmatpush1.msra.mxu0 %v1074
    %1076 = vmatprep.subr.mxu0 0.0
    %v1077 = vand.u32 %v23, 4294901760
    %v1078 = vsub.f32 %v23, %v1077
    %v1079 = vand.u32 %v1078, 4294901760
    %v1080 = vsub.f32 %v1078, %v1079
    %v1081 = vand.u32 %v1080, 4294901760
    %1082 = vmatpush1.msra.mxu0 %v1081
    %1083 = vmatprep.subr.mxu0 0.0
    %v1084 = vand.u32 %v24, 4294901760
    %v1085 = vsub.f32 %v24, %v1084
    %v1086 = vand.u32 %v1085, 4294901760
    %v1087 = vsub.f32 %v1085, %v1086
    %v1088 = vand.u32 %v1087, 4294901760
    %1089 = vmatpush1.msra.mxu0 %v1088
    %1090 = vmatprep.subr.mxu0 0.0
    %v1091 = vand.u32 %v25, 4294901760
    %v1092 = vsub.f32 %v25, %v1091
    %v1093 = vand.u32 %v1092, 4294901760
    %v1094 = vsub.f32 %v1092, %v1093
    %v1095 = vand.u32 %v1094, 4294901760
    %1096 = vmatpush1.msra.mxu0 %v1095
    %1097 = vmatprep.subr.mxu0 0.0
    %v1098 = vand.u32 %v26, 4294901760
    %v1099 = vsub.f32 %v26, %v1098
    %v1100 = vand.u32 %v1099, 4294901760
    %v1101 = vsub.f32 %v1099, %v1100
    %v1102 = vand.u32 %v1101, 4294901760
    %1103 = vmatpush1.msra.mxu0 %v1102
    %1104 = vmatprep.subr.mxu0 0.0
    %v1105 = vand.u32 %v27, 4294901760
    %v1106 = vsub.f32 %v27, %v1105
    %v1107 = vand.u32 %v1106, 4294901760
    %v1108 = vsub.f32 %v1106, %v1107
    %v1109 = vand.u32 %v1108, 4294901760
    %1110 = vmatpush1.msra.mxu0 %v1109
    %1111 = vmatprep.subr.mxu0 0.0
    %v1112 = vand.u32 %v28, 4294901760
    %v1113 = vsub.f32 %v28, %v1112
    %v1114 = vand.u32 %v1113, 4294901760
    %v1115 = vsub.f32 %v1113, %v1114
    %v1116 = vand.u32 %v1115, 4294901760
    %1117 = vmatpush1.msra.mxu0 %v1116
    %1118 = vmatprep.subr.mxu0 0.0
    %v1119 = vand.u32 %v29, 4294901760
    %v1120 = vsub.f32 %v29, %v1119
    %v1121 = vand.u32 %v1120, 4294901760
    %v1122 = vsub.f32 %v1120, %v1121
    %v1123 = vand.u32 %v1122, 4294901760
    %1124 = vmatpush1.msra.mxu0 %v1123
    %1125 = vmatprep.subr.mxu0 0.0
    %v1126 = vand.u32 %v30, 4294901760
    %v1127 = vsub.f32 %v30, %v1126
    %v1128 = vand.u32 %v1127, 4294901760
    %v1129 = vsub.f32 %v1127, %v1128
    %v1130 = vand.u32 %v1129, 4294901760
    %1131 = vmatpush1.msra.mxu0 %v1130
    %1132 = vmatprep.subr.mxu0 0.0
    %v1133 = vand.u32 %v31, 4294901760
    %v1134 = vsub.f32 %v31, %v1133
    %v1135 = vand.u32 %v1134, 4294901760
    %v1136 = vsub.f32 %v1134, %v1135
    %v1137 = vand.u32 %v1136, 4294901760
    %1138 = vmatpush1.msra.mxu0 %v1137
    %1139 = vmatprep.subr.mxu0 0.0
    %v1140 = vand.u32 %v32, 4294901760
    %v1141 = vsub.f32 %v32, %v1140
    %v1142 = vand.u32 %v1141, 4294901760
    %v1143 = vsub.f32 %v1141, %v1142
    %v1144 = vand.u32 %v1143, 4294901760
    %1145 = vmatpush1.msra.mxu0 %v1144
    %1146 = vmatprep.subr.mxu0 0.0
    %v1147 = vand.u32 %v33, 4294901760
    %v1148 = vsub.f32 %v33, %v1147
    %v1149 = vand.u32 %v1148, 4294901760
    %v1150 = vsub.f32 %v1148, %v1149
    %v1151 = vand.u32 %v1150, 4294901760
    %1152 = vmatpush1.msra.mxu0 %v1151
    %1153 = vmatprep.subr.mxu0 0.0
    %v1154 = vand.u32 %v34, 4294901760
    %v1155 = vsub.f32 %v34, %v1154
    %v1156 = vand.u32 %v1155, 4294901760
    %v1157 = vsub.f32 %v1155, %v1156
    %v1158 = vand.u32 %v1157, 4294901760
    %1159 = vmatpush1.msra.mxu0 %v1158
    %1160 = vmatprep.subr.mxu0 0.0
    %v1161 = vand.u32 %v35, 4294901760
    %v1162 = vsub.f32 %v35, %v1161
    %v1163 = vand.u32 %v1162, 4294901760
    %v1164 = vsub.f32 %v1162, %v1163
    %v1165 = vand.u32 %v1164, 4294901760
    %1166 = vmatpush1.msra.mxu0 %v1165
    %1167 = vmatprep.subr.mxu0 0.0
    %v1168 = vand.u32 %v36, 4294901760
    %v1169 = vsub.f32 %v36, %v1168
    %v1170 = vand.u32 %v1169, 4294901760
    %v1171 = vsub.f32 %v1169, %v1170
    %v1172 = vand.u32 %v1171, 4294901760
    %1173 = vmatpush1.msra.mxu0 %v1172
    %1174 = vmatprep.subr.mxu0 0.0
    %v1175 = vand.u32 %v37, 4294901760
    %v1176 = vsub.f32 %v37, %v1175
    %v1177 = vand.u32 %v1176, 4294901760
    %v1178 = vsub.f32 %v1176, %v1177
    %v1179 = vand.u32 %v1178, 4294901760
    %1180 = vmatpush1.msra.mxu0 %v1179
    %1181 = vmatprep.subr.mxu0 0.0
    %v1182 = vand.u32 %v38, 4294901760
    %v1183 = vsub.f32 %v38, %v1182
    %v1184 = vand.u32 %v1183, 4294901760
    %v1185 = vsub.f32 %v1183, %v1184
    %v1186 = vand.u32 %v1185, 4294901760
    %1187 = vmatpush1.msra.mxu0 %v1186
    %1188 = vmatprep.subr.mxu0 0.0
    %v1189 = vand.u32 %v39, 4294901760
    %v1190 = vsub.f32 %v39, %v1189
    %v1191 = vand.u32 %v1190, 4294901760
    %v1192 = vsub.f32 %v1190, %v1191
    %v1193 = vand.u32 %v1192, 4294901760
    %1194 = vmatpush1.msra.mxu0 %v1193
    %1195 = vmatprep.subr.mxu0 0.0
    %v1196 = vand.u32 %v40, 4294901760
    %v1197 = vsub.f32 %v40, %v1196
    %v1198 = vand.u32 %v1197, 4294901760
    %v1199 = vsub.f32 %v1197, %v1198
    %v1200 = vand.u32 %v1199, 4294901760
    %1201 = vmatpush1.msra.mxu0 %v1200
    %1202 = vmatprep.subr.mxu0 0.0
    %v1203 = vand.u32 %v41, 4294901760
    %v1204 = vsub.f32 %v41, %v1203
    %v1205 = vand.u32 %v1204, 4294901760
    %v1206 = vsub.f32 %v1204, %v1205
    %v1207 = vand.u32 %v1206, 4294901760
    %1208 = vmatpush1.msra.mxu0 %v1207
    %1209 = vmatprep.subr.mxu0 0.0
    %v1210 = vand.u32 %v42, 4294901760
    %v1211 = vsub.f32 %v42, %v1210
    %v1212 = vand.u32 %v1211, 4294901760
    %v1213 = vsub.f32 %v1211, %v1212
    %v1214 = vand.u32 %v1213, 4294901760
    %1215 = vmatpush1.msra.mxu0 %v1214
    %1216 = vmatprep.subr.mxu0 0.0
    %v1217 = vand.u32 %v43, 4294901760
    %v1218 = vsub.f32 %v43, %v1217
    %v1219 = vand.u32 %v1218, 4294901760
    %v1220 = vsub.f32 %v1218, %v1219
    %v1221 = vand.u32 %v1220, 4294901760
    %1222 = vmatpush1.msra.mxu0 %v1221
    %1223 = vmatprep.subr.mxu0 0.0
    %v1224 = vand.u32 %v44, 4294901760
    %v1225 = vsub.f32 %v44, %v1224
    %v1226 = vand.u32 %v1225, 4294901760
    %v1227 = vsub.f32 %v1225, %v1226
    %v1228 = vand.u32 %v1227, 4294901760
    %1229 = vmatpush1.msra.mxu0 %v1228
    %1230 = vmatprep.subr.mxu0 0.0
    %v1231 = vand.u32 %v45, 4294901760
    %v1232 = vsub.f32 %v45, %v1231
    %v1233 = vand.u32 %v1232, 4294901760
    %v1234 = vsub.f32 %v1232, %v1233
    %v1235 = vand.u32 %v1234, 4294901760
    %1236 = vmatpush1.msra.mxu0 %v1235
    %1237 = vmatprep.subr.mxu0 0.0
    %v1238 = vand.u32 %v46, 4294901760
    %v1239 = vsub.f32 %v46, %v1238
    %v1240 = vand.u32 %v1239, 4294901760
    %v1241 = vsub.f32 %v1239, %v1240
    %v1242 = vand.u32 %v1241, 4294901760
    %1243 = vmatpush1.msra.mxu0 %v1242
    %1244 = vmatprep.subr.mxu0 0.0
    %v1245 = vand.u32 %v47, 4294901760
    %v1246 = vsub.f32 %v47, %v1245
    %v1247 = vand.u32 %v1246, 4294901760
    %v1248 = vsub.f32 %v1246, %v1247
    %v1249 = vand.u32 %v1248, 4294901760
    %1250 = vmatpush1.msra.mxu0 %v1249
    %1251 = vmatprep.subr.mxu0 0.0
    %v1252 = vand.u32 %v48, 4294901760
    %v1253 = vsub.f32 %v48, %v1252
    %v1254 = vand.u32 %v1253, 4294901760
    %v1255 = vsub.f32 %v1253, %v1254
    %v1256 = vand.u32 %v1255, 4294901760
    %1257 = vmatpush1.msra.mxu0 %v1256
    %v1258 = vand.u32 %v920, 4294901760
    %1259 = vmatprep.mubr.f32.mxu0 %v1258
    %v1260 = vand.u32 %v918, 4294901760
    %1261 = vmatmul.mubr.f32.gmra.mrb[0].mxu0 %v1260
    %v1262 = vpop.f32.mrb[0].mxu0
    %v1263 = vadd.f32 %v1031, %v1262
    %v1264 = vpop.f32.mrb[0].mxu0
    %1265 = vdwg.mxu0
    %1266 = vmatprep.subr.mxu0 0.0
    %v1267 = vand.u32 %v17, 4294901760
    %v1268 = vsub.f32 %v17, %v1267
    %1269 = vmatpush1.msra.mxu0 %v1268
    %1270 = vmatprep.subr.mxu0 0.0
    %v1271 = vand.u32 %v18, 4294901760
    %v1272 = vsub.f32 %v18, %v1271
    %1273 = vmatpush1.msra.mxu0 %v1272
    %1274 = vmatprep.subr.mxu0 0.0
    %v1275 = vand.u32 %v19, 4294901760
    %v1276 = vsub.f32 %v19, %v1275
    %1277 = vmatpush1.msra.mxu0 %v1276
    %1278 = vmatprep.subr.mxu0 0.0
    %v1279 = vand.u32 %v20, 4294901760
    %v1280 = vsub.f32 %v20, %v1279
    %1281 = vmatpush1.msra.mxu0 %v1280
    %1282 = vmatprep.subr.mxu0 0.0
    %v1283 = vand.u32 %v21, 4294901760
    %v1284 = vsub.f32 %v21, %v1283
    %1285 = vmatpush1.msra.mxu0 %v1284
    %1286 = vmatprep.subr.mxu0 0.0
    %v1287 = vand.u32 %v22, 4294901760
    %v1288 = vsub.f32 %v22, %v1287
    %1289 = vmatpush1.msra.mxu0 %v1288
    %1290 = vmatprep.subr.mxu0 0.0
    %v1291 = vand.u32 %v23, 4294901760
    %v1292 = vsub.f32 %v23, %v1291
    %1293 = vmatpush1.msra.mxu0 %v1292
    %1294 = vmatprep.subr.mxu0 0.0
    %v1295 = vand.u32 %v24, 4294901760
    %v1296 = vsub.f32 %v24, %v1295
    %1297 = vmatpush1.msra.mxu0 %v1296
    %1298 = vmatprep.subr.mxu0 0.0
    %v1299 = vand.u32 %v25, 4294901760
    %v1300 = vsub.f32 %v25, %v1299
    %1301 = vmatpush1.msra.mxu0 %v1300
    %1302 = vmatprep.subr.mxu0 0.0
    %v1303 = vand.u32 %v26, 4294901760
    %v1304 = vsub.f32 %v26, %v1303
    %1305 = vmatpush1.msra.mxu0 %v1304
    %1306 = vmatprep.subr.mxu0 0.0
    %v1307 = vand.u32 %v27, 4294901760
    %v1308 = vsub.f32 %v27, %v1307
    %1309 = vmatpush1.msra.mxu0 %v1308
    %1310 = vmatprep.subr.mxu0 0.0
    %v1311 = vand.u32 %v28, 4294901760
    %v1312 = vsub.f32 %v28, %v1311
    %1313 = vmatpush1.msra.mxu0 %v1312
    %1314 = vmatprep.subr.mxu0 0.0
    %v1315 = vand.u32 %v29, 4294901760
    %v1316 = vsub.f32 %v29, %v1315
    %1317 = vmatpush1.msra.mxu0 %v1316
    %1318 = vmatprep.subr.mxu0 0.0
    %v1319 = vand.u32 %v30, 4294901760
    %v1320 = vsub.f32 %v30, %v1319
    %1321 = vmatpush1.msra.mxu0 %v1320
    %1322 = vmatprep.subr.mxu0 0.0
    %v1323 = vand.u32 %v31, 4294901760
    %v1324 = vsub.f32 %v31, %v1323
    %1325 = vmatpush1.msra.mxu0 %v1324
    %1326 = vmatprep.subr.mxu0 0.0
    %v1327 = vand.u32 %v32, 4294901760
    %v1328 = vsub.f32 %v32, %v1327
    %1329 = vmatpush1.msra.mxu0 %v1328
    %1330 = vmatprep.subr.mxu0 0.0
    %v1331 = vand.u32 %v33, 4294901760
    %v1332 = vsub.f32 %v33, %v1331
    %1333 = vmatpush1.msra.mxu0 %v1332
    %1334 = vmatprep.subr.mxu0 0.0
    %v1335 = vand.u32 %v34, 4294901760
    %v1336 = vsub.f32 %v34, %v1335
    %1337 = vmatpush1.msra.mxu0 %v1336
    %1338 = vmatprep.subr.mxu0 0.0
    %v1339 = vand.u32 %v35, 4294901760
    %v1340 = vsub.f32 %v35, %v1339
    %1341 = vmatpush1.msra.mxu0 %v1340
    %1342 = vmatprep.subr.mxu0 0.0
    %v1343 = vand.u32 %v36, 4294901760
    %v1344 = vsub.f32 %v36, %v1343
    %1345 = vmatpush1.msra.mxu0 %v1344
    %1346 = vmatprep.subr.mxu0 0.0
    %v1347 = vand.u32 %v37, 4294901760
    %v1348 = vsub.f32 %v37, %v1347
    %1349 = vmatpush1.msra.mxu0 %v1348
    %1350 = vmatprep.subr.mxu0 0.0
    %v1351 = vand.u32 %v38, 4294901760
    %v1352 = vsub.f32 %v38, %v1351
    %1353 = vmatpush1.msra.mxu0 %v1352
    %1354 = vmatprep.subr.mxu0 0.0
    %v1355 = vand.u32 %v39, 4294901760
    %v1356 = vsub.f32 %v39, %v1355
    %1357 = vmatpush1.msra.mxu0 %v1356
    %1358 = vmatprep.subr.mxu0 0.0
    %v1359 = vand.u32 %v40, 4294901760
    %v1360 = vsub.f32 %v40, %v1359
    %1361 = vmatpush1.msra.mxu0 %v1360
    %1362 = vmatprep.subr.mxu0 0.0
    %v1363 = vand.u32 %v41, 4294901760
    %v1364 = vsub.f32 %v41, %v1363
    %1365 = vmatpush1.msra.mxu0 %v1364
    %1366 = vmatprep.subr.mxu0 0.0
    %v1367 = vand.u32 %v42, 4294901760
    %v1368 = vsub.f32 %v42, %v1367
    %1369 = vmatpush1.msra.mxu0 %v1368
    %1370 = vmatprep.subr.mxu0 0.0
    %v1371 = vand.u32 %v43, 4294901760
    %v1372 = vsub.f32 %v43, %v1371
    %1373 = vmatpush1.msra.mxu0 %v1372
    %1374 = vmatprep.subr.mxu0 0.0
    %v1375 = vand.u32 %v44, 4294901760
    %v1376 = vsub.f32 %v44, %v1375
    %1377 = vmatpush1.msra.mxu0 %v1376
    %1378 = vmatprep.subr.mxu0 0.0
    %v1379 = vand.u32 %v45, 4294901760
    %v1380 = vsub.f32 %v45, %v1379
    %1381 = vmatpush1.msra.mxu0 %v1380
    %1382 = vmatprep.subr.mxu0 0.0
    %v1383 = vand.u32 %v46, 4294901760
    %v1384 = vsub.f32 %v46, %v1383
    %1385 = vmatpush1.msra.mxu0 %v1384
    %1386 = vmatprep.subr.mxu0 0.0
    %v1387 = vand.u32 %v47, 4294901760
    %v1388 = vsub.f32 %v47, %v1387
    %1389 = vmatpush1.msra.mxu0 %v1388
    %1390 = vmatprep.subr.mxu0 0.0
    %v1391 = vand.u32 %v48, 4294901760
    %v1392 = vsub.f32 %v48, %v1391
    %1393 = vmatpush1.msra.mxu0 %v1392
    %v1394 = vand.u32 %v920, 4294901760
    %v1395 = vsub.f32 %v920, %v1394
    %1396 = vmatprep.mubr.f32.mxu0 %v1395
    %v1397 = vand.u32 %v918, 4294901760
    %v1398 = vsub.f32 %v918, %v1397
    %1399 = vmatmul.mubr.f32.gmra.mrb[0].mxu0 %v1398
    %v1400 = vpop.f32.mrb[0].mxu0
    %v1401 = vadd.f32 %v1263, %v1400
    %v1402 = vpop.f32.mrb[0].mxu0
    %1403 = vdwg.mxu0
    %1404 = vmatprep.subr.mxu0 0.0
    %v1405 = vand.u32 %v17, 4294901760
    %1406 = vmatpush1.msra.mxu0 %v1405
    %1407 = vmatprep.subr.mxu0 0.0
    %v1408 = vand.u32 %v18, 4294901760
    %1409 = vmatpush1.msra.mxu0 %v1408
    %1410 = vmatprep.subr.mxu0 0.0
    %v1411 = vand.u32 %v19, 4294901760
    %1412 = vmatpush1.msra.mxu0 %v1411
    %1413 = vmatprep.subr.mxu0 0.0
    %v1414 = vand.u32 %v20, 4294901760
    %1415 = vmatpush1.msra.mxu0 %v1414
    %1416 = vmatprep.subr.mxu0 0.0
    %v1417 = vand.u32 %v21, 4294901760
    %1418 = vmatpush1.msra.mxu0 %v1417
    %1419 = vmatprep.subr.mxu0 0.0
    %v1420 = vand.u32 %v22, 4294901760
    %1421 = vmatpush1.msra.mxu0 %v1420
    %1422 = vmatprep.subr.mxu0 0.0
    %v1423 = vand.u32 %v23, 4294901760
    %1424 = vmatpush1.msra.mxu0 %v1423
    %1425 = vmatprep.subr.mxu0 0.0
    %v1426 = vand.u32 %v24, 4294901760
    %1427 = vmatpush1.msra.mxu0 %v1426
    %1428 = vmatprep.subr.mxu0 0.0
    %v1429 = vand.u32 %v25, 4294901760
    %1430 = vmatpush1.msra.mxu0 %v1429
    %1431 = vmatprep.subr.mxu0 0.0
    %v1432 = vand.u32 %v26, 4294901760
    %1433 = vmatpush1.msra.mxu0 %v1432
    %1434 = vmatprep.subr.mxu0 0.0
    %v1435 = vand.u32 %v27, 4294901760
    %1436 = vmatpush1.msra.mxu0 %v1435
    %1437 = vmatprep.subr.mxu0 0.0
    %v1438 = vand.u32 %v28, 4294901760
    %1439 = vmatpush1.msra.mxu0 %v1438
    %1440 = vmatprep.subr.mxu0 0.0
    %v1441 = vand.u32 %v29, 4294901760
    %1442 = vmatpush1.msra.mxu0 %v1441
    %1443 = vmatprep.subr.mxu0 0.0
    %v1444 = vand.u32 %v30, 4294901760
    %1445 = vmatpush1.msra.mxu0 %v1444
    %1446 = vmatprep.subr.mxu0 0.0
    %v1447 = vand.u32 %v31, 4294901760
    %1448 = vmatpush1.msra.mxu0 %v1447
    %1449 = vmatprep.subr.mxu0 0.0
    %v1450 = vand.u32 %v32, 4294901760
    %1451 = vmatpush1.msra.mxu0 %v1450
    %1452 = vmatprep.subr.mxu0 0.0
    %v1453 = vand.u32 %v33, 4294901760
    %1454 = vmatpush1.msra.mxu0 %v1453
    %1455 = vmatprep.subr.mxu0 0.0
    %v1456 = vand.u32 %v34, 4294901760
    %1457 = vmatpush1.msra.mxu0 %v1456
    %1458 = vmatprep.subr.mxu0 0.0
    %v1459 = vand.u32 %v35, 4294901760
    %1460 = vmatpush1.msra.mxu0 %v1459
    %1461 = vmatprep.subr.mxu0 0.0
    %v1462 = vand.u32 %v36, 4294901760
    %1463 = vmatpush1.msra.mxu0 %v1462
    %1464 = vmatprep.subr.mxu0 0.0
    %v1465 = vand.u32 %v37, 4294901760
    %1466 = vmatpush1.msra.mxu0 %v1465
    %1467 = vmatprep.subr.mxu0 0.0
    %v1468 = vand.u32 %v38, 4294901760
    %1469 = vmatpush1.msra.mxu0 %v1468
    %1470 = vmatprep.subr.mxu0 0.0
    %v1471 = vand.u32 %v39, 4294901760
    %1472 = vmatpush1.msra.mxu0 %v1471
    %1473 = vmatprep.subr.mxu0 0.0
    %v1474 = vand.u32 %v40, 4294901760
    %1475 = vmatpush1.msra.mxu0 %v1474
    %1476 = vmatprep.subr.mxu0 0.0
    %v1477 = vand.u32 %v41, 4294901760
    %1478 = vmatpush1.msra.mxu0 %v1477
    %1479 = vmatprep.subr.mxu0 0.0
    %v1480 = vand.u32 %v42, 4294901760
    %1481 = vmatpush1.msra.mxu0 %v1480
    %1482 = vmatprep.subr.mxu0 0.0
    %v1483 = vand.u32 %v43, 4294901760
    %1484 = vmatpush1.msra.mxu0 %v1483
    %1485 = vmatprep.subr.mxu0 0.0
    %v1486 = vand.u32 %v44, 4294901760
    %1487 = vmatpush1.msra.mxu0 %v1486
    %1488 = vmatprep.subr.mxu0 0.0
    %v1489 = vand.u32 %v45, 4294901760
    %1490 = vmatpush1.msra.mxu0 %v1489
    %1491 = vmatprep.subr.mxu0 0.0
    %v1492 = vand.u32 %v46, 4294901760
    %1493 = vmatpush1.msra.mxu0 %v1492
    %1494 = vmatprep.subr.mxu0 0.0
    %v1495 = vand.u32 %v47, 4294901760
    %1496 = vmatpush1.msra.mxu0 %v1495
    %1497 = vmatprep.subr.mxu0 0.0
    %v1498 = vand.u32 %v48, 4294901760
    %1499 = vmatpush1.msra.mxu0 %v1498
    %v1500 = vand.u32 %v920, 4294901760
    %v1501 = vsub.f32 %v920, %v1500
    %v1502 = vand.u32 %v1501, 4294901760
    %1503 = vmatprep.mubr.f32.mxu0 %v1502
    %v1504 = vand.u32 %v918, 4294901760
    %v1505 = vsub.f32 %v918, %v1504
    %v1506 = vand.u32 %v1505, 4294901760
    %1507 = vmatmul.mubr.f32.gmra.mrb[0].mxu0 %v1506
    %v1508 = vpop.f32.mrb[0].mxu0
    %v1509 = vadd.f32 %v1401, %v1508
    %v1510 = vpop.f32.mrb[0].mxu0
    %1511 = vdwg.mxu0
    %1512 = vmatprep.subr.mxu0 0.0
    %v1513 = vand.u32 %v17, 4294901760
    %v1514 = vsub.f32 %v17, %v1513
    %v1515 = vand.u32 %v1514, 4294901760
    %1516 = vmatpush1.msra.mxu0 %v1515
    %1517 = vmatprep.subr.mxu0 0.0
    %v1518 = vand.u32 %v18, 4294901760
    %v1519 = vsub.f32 %v18, %v1518
    %v1520 = vand.u32 %v1519, 4294901760
    %1521 = vmatpush1.msra.mxu0 %v1520
    %1522 = vmatprep.subr.mxu0 0.0
    %v1523 = vand.u32 %v19, 4294901760
    %v1524 = vsub.f32 %v19, %v1523
    %v1525 = vand.u32 %v1524, 4294901760
    %1526 = vmatpush1.msra.mxu0 %v1525
    %1527 = vmatprep.subr.mxu0 0.0
    %v1528 = vand.u32 %v20, 4294901760
    %v1529 = vsub.f32 %v20, %v1528
    %v1530 = vand.u32 %v1529, 4294901760
    %1531 = vmatpush1.msra.mxu0 %v1530
    %1532 = vmatprep.subr.mxu0 0.0
    %v1533 = vand.u32 %v21, 4294901760
    %v1534 = vsub.f32 %v21, %v1533
    %v1535 = vand.u32 %v1534, 4294901760
    %1536 = vmatpush1.msra.mxu0 %v1535
    %1537 = vmatprep.subr.mxu0 0.0
    %v1538 = vand.u32 %v22, 4294901760
    %v1539 = vsub.f32 %v22, %v1538
    %v1540 = vand.u32 %v1539, 4294901760
    %1541 = vmatpush1.msra.mxu0 %v1540
    %1542 = vmatprep.subr.mxu0 0.0
    %v1543 = vand.u32 %v23, 4294901760
    %v1544 = vsub.f32 %v23, %v1543
    %v1545 = vand.u32 %v1544, 4294901760
    %1546 = vmatpush1.msra.mxu0 %v1545
    %1547 = vmatprep.subr.mxu0 0.0
    %v1548 = vand.u32 %v24, 4294901760
    %v1549 = vsub.f32 %v24, %v1548
    %v1550 = vand.u32 %v1549, 4294901760
    %1551 = vmatpush1.msra.mxu0 %v1550
    %1552 = vmatprep.subr.mxu0 0.0
    %v1553 = vand.u32 %v25, 4294901760
    %v1554 = vsub.f32 %v25, %v1553
    %v1555 = vand.u32 %v1554, 4294901760
    %1556 = vmatpush1.msra.mxu0 %v1555
    %1557 = vmatprep.subr.mxu0 0.0
    %v1558 = vand.u32 %v26, 4294901760
    %v1559 = vsub.f32 %v26, %v1558
    %v1560 = vand.u32 %v1559, 4294901760
    %1561 = vmatpush1.msra.mxu0 %v1560
    %1562 = vmatprep.subr.mxu0 0.0
    %v1563 = vand.u32 %v27, 4294901760
    %v1564 = vsub.f32 %v27, %v1563
    %v1565 = vand.u32 %v1564, 4294901760
    %1566 = vmatpush1.msra.mxu0 %v1565
    %1567 = vmatprep.subr.mxu0 0.0
    %v1568 = vand.u32 %v28, 4294901760
    %v1569 = vsub.f32 %v28, %v1568
    %v1570 = vand.u32 %v1569, 4294901760
    %1571 = vmatpush1.msra.mxu0 %v1570
    %1572 = vmatprep.subr.mxu0 0.0
    %v1573 = vand.u32 %v29, 4294901760
    %v1574 = vsub.f32 %v29, %v1573
    %v1575 = vand.u32 %v1574, 4294901760
    %1576 = vmatpush1.msra.mxu0 %v1575
    %1577 = vmatprep.subr.mxu0 0.0
    %v1578 = vand.u32 %v30, 4294901760
    %v1579 = vsub.f32 %v30, %v1578
    %v1580 = vand.u32 %v1579, 4294901760
    %1581 = vmatpush1.msra.mxu0 %v1580
    %1582 = vmatprep.subr.mxu0 0.0
    %v1583 = vand.u32 %v31, 4294901760
    %v1584 = vsub.f32 %v31, %v1583
    %v1585 = vand.u32 %v1584, 4294901760
    %1586 = vmatpush1.msra.mxu0 %v1585
    %1587 = vmatprep.subr.mxu0 0.0
    %v1588 = vand.u32 %v32, 4294901760
    %v1589 = vsub.f32 %v32, %v1588
    %v1590 = vand.u32 %v1589, 4294901760
    %1591 = vmatpush1.msra.mxu0 %v1590
    %1592 = vmatprep.subr.mxu0 0.0
    %v1593 = vand.u32 %v33, 4294901760
    %v1594 = vsub.f32 %v33, %v1593
    %v1595 = vand.u32 %v1594, 4294901760
    %1596 = vmatpush1.msra.mxu0 %v1595
    %1597 = vmatprep.subr.mxu0 0.0
    %v1598 = vand.u32 %v34, 4294901760
    %v1599 = vsub.f32 %v34, %v1598
    %v1600 = vand.u32 %v1599, 4294901760
    %1601 = vmatpush1.msra.mxu0 %v1600
    %1602 = vmatprep.subr.mxu0 0.0
    %v1603 = vand.u32 %v35, 4294901760
    %v1604 = vsub.f32 %v35, %v1603
    %v1605 = vand.u32 %v1604, 4294901760
    %1606 = vmatpush1.msra.mxu0 %v1605
    %1607 = vmatprep.subr.mxu0 0.0
    %v1608 = vand.u32 %v36, 4294901760
    %v1609 = vsub.f32 %v36, %v1608
    %v1610 = vand.u32 %v1609, 4294901760
    %1611 = vmatpush1.msra.mxu0 %v1610
    %1612 = vmatprep.subr.mxu0 0.0
    %v1613 = vand.u32 %v37, 4294901760
    %v1614 = vsub.f32 %v37, %v1613
    %v1615 = vand.u32 %v1614, 4294901760
    %1616 = vmatpush1.msra.mxu0 %v1615
    %1617 = vmatprep.subr.mxu0 0.0
    %v1618 = vand.u32 %v38, 4294901760
    %v1619 = vsub.f32 %v38, %v1618
    %v1620 = vand.u32 %v1619, 4294901760
    %1621 = vmatpush1.msra.mxu0 %v1620
    %1622 = vmatprep.subr.mxu0 0.0
    %v1623 = vand.u32 %v39, 4294901760
    %v1624 = vsub.f32 %v39, %v1623
    %v1625 = vand.u32 %v1624, 4294901760
    %1626 = vmatpush1.msra.mxu0 %v1625
    %1627 = vmatprep.subr.mxu0 0.0
    %v1628 = vand.u32 %v40, 4294901760
    %v1629 = vsub.f32 %v40, %v1628
    %v1630 = vand.u32 %v1629, 4294901760
    %1631 = vmatpush1.msra.mxu0 %v1630
    %1632 = vmatprep.subr.mxu0 0.0
    %v1633 = vand.u32 %v41, 4294901760
    %v1634 = vsub.f32 %v41, %v1633
    %v1635 = vand.u32 %v1634, 4294901760
    %1636 = vmatpush1.msra.mxu0 %v1635
    %1637 = vmatprep.subr.mxu0 0.0
    %v1638 = vand.u32 %v42, 4294901760
    %v1639 = vsub.f32 %v42, %v1638
    %v1640 = vand.u32 %v1639, 4294901760
    %1641 = vmatpush1.msra.mxu0 %v1640
    %1642 = vmatprep.subr.mxu0 0.0
    %v1643 = vand.u32 %v43, 4294901760
    %v1644 = vsub.f32 %v43, %v1643
    %v1645 = vand.u32 %v1644, 4294901760
    %1646 = vmatpush1.msra.mxu0 %v1645
    %1647 = vmatprep.subr.mxu0 0.0
    %v1648 = vand.u32 %v44, 4294901760
    %v1649 = vsub.f32 %v44, %v1648
    %v1650 = vand.u32 %v1649, 4294901760
    %1651 = vmatpush1.msra.mxu0 %v1650
    %1652 = vmatprep.subr.mxu0 0.0
    %v1653 = vand.u32 %v45, 4294901760
    %v1654 = vsub.f32 %v45, %v1653
    %v1655 = vand.u32 %v1654, 4294901760
    %1656 = vmatpush1.msra.mxu0 %v1655
    %1657 = vmatprep.subr.mxu0 0.0
    %v1658 = vand.u32 %v46, 4294901760
    %v1659 = vsub.f32 %v46, %v1658
    %v1660 = vand.u32 %v1659, 4294901760
    %1661 = vmatpush1.msra.mxu0 %v1660
    %1662 = vmatprep.subr.mxu0 0.0
    %v1663 = vand.u32 %v47, 4294901760
    %v1664 = vsub.f32 %v47, %v1663
    %v1665 = vand.u32 %v1664, 4294901760
    %1666 = vmatpush1.msra.mxu0 %v1665
    %1667 = vmatprep.subr.mxu0 0.0
    %v1668 = vand.u32 %v48, 4294901760
    %v1669 = vsub.f32 %v48, %v1668
    %v1670 = vand.u32 %v1669, 4294901760
    %1671 = vmatpush1.msra.mxu0 %v1670
    %v1672 = vand.u32 %v920, 4294901760
    %1673 = vmatprep.mubr.f32.mxu0 %v1672
    %v1674 = vand.u32 %v918, 4294901760
    %1675 = vmatmul.mubr.f32.gmra.mrb[0].mxu0 %v1674
    %v1676 = vpop.f32.mrb[0].mxu0
    %v1677 = vadd.f32 %v1509, %v1676
    %v1678 = vpop.f32.mrb[0].mxu0
    %1679 = vdwg.mxu0
    %1680 = vmatprep.subr.mxu0 0.0
    %v1681 = vand.u32 %v17, 4294901760
    %1682 = vmatpush1.msra.mxu0 %v1681
    %1683 = vmatprep.subr.mxu0 0.0
    %v1684 = vand.u32 %v18, 4294901760
    %1685 = vmatpush1.msra.mxu0 %v1684
    %1686 = vmatprep.subr.mxu0 0.0
    %v1687 = vand.u32 %v19, 4294901760
    %1688 = vmatpush1.msra.mxu0 %v1687
    %1689 = vmatprep.subr.mxu0 0.0
    %v1690 = vand.u32 %v20, 4294901760
    %1691 = vmatpush1.msra.mxu0 %v1690
    %1692 = vmatprep.subr.mxu0 0.0
    %v1693 = vand.u32 %v21, 4294901760
    %1694 = vmatpush1.msra.mxu0 %v1693
    %1695 = vmatprep.subr.mxu0 0.0
    %v1696 = vand.u32 %v22, 4294901760
    %1697 = vmatpush1.msra.mxu0 %v1696
    %1698 = vmatprep.subr.mxu0 0.0
    %v1699 = vand.u32 %v23, 4294901760
    %1700 = vmatpush1.msra.mxu0 %v1699
    %1701 = vmatprep.subr.mxu0 0.0
    %v1702 = vand.u32 %v24, 4294901760
    %1703 = vmatpush1.msra.mxu0 %v1702
    %1704 = vmatprep.subr.mxu0 0.0
    %v1705 = vand.u32 %v25, 4294901760
    %1706 = vmatpush1.msra.mxu0 %v1705
    %1707 = vmatprep.subr.mxu0 0.0
    %v1708 = vand.u32 %v26, 4294901760
    %1709 = vmatpush1.msra.mxu0 %v1708
    %1710 = vmatprep.subr.mxu0 0.0
    %v1711 = vand.u32 %v27, 4294901760
    %1712 = vmatpush1.msra.mxu0 %v1711
    %1713 = vmatprep.subr.mxu0 0.0
    %v1714 = vand.u32 %v28, 4294901760
    %1715 = vmatpush1.msra.mxu0 %v1714
    %1716 = vmatprep.subr.mxu0 0.0
    %v1717 = vand.u32 %v29, 4294901760
    %1718 = vmatpush1.msra.mxu0 %v1717
    %1719 = vmatprep.subr.mxu0 0.0
    %v1720 = vand.u32 %v30, 4294901760
    %1721 = vmatpush1.msra.mxu0 %v1720
    %1722 = vmatprep.subr.mxu0 0.0
    %v1723 = vand.u32 %v31, 4294901760
    %1724 = vmatpush1.msra.mxu0 %v1723
    %1725 = vmatprep.subr.mxu0 0.0
    %v1726 = vand.u32 %v32, 4294901760
    %1727 = vmatpush1.msra.mxu0 %v1726
    %1728 = vmatprep.subr.mxu0 0.0
    %v1729 = vand.u32 %v33, 4294901760
    %1730 = vmatpush1.msra.mxu0 %v1729
    %1731 = vmatprep.subr.mxu0 0.0
    %v1732 = vand.u32 %v34, 4294901760
    %1733 = vmatpush1.msra.mxu0 %v1732
    %1734 = vmatprep.subr.mxu0 0.0
    %v1735 = vand.u32 %v35, 4294901760
    %1736 = vmatpush1.msra.mxu0 %v1735
    %1737 = vmatprep.subr.mxu0 0.0
    %v1738 = vand.u32 %v36, 4294901760
    %1739 = vmatpush1.msra.mxu0 %v1738
    %1740 = vmatprep.subr.mxu0 0.0
    %v1741 = vand.u32 %v37, 4294901760
    %1742 = vmatpush1.msra.mxu0 %v1741
    %1743 = vmatprep.subr.mxu0 0.0
    %v1744 = vand.u32 %v38, 4294901760
    %1745 = vmatpush1.msra.mxu0 %v1744
    %1746 = vmatprep.subr.mxu0 0.0
    %v1747 = vand.u32 %v39, 4294901760
    %1748 = vmatpush1.msra.mxu0 %v1747
    %1749 = vmatprep.subr.mxu0 0.0
    %v1750 = vand.u32 %v40, 4294901760
    %1751 = vmatpush1.msra.mxu0 %v1750
    %1752 = vmatprep.subr.mxu0 0.0
    %v1753 = vand.u32 %v41, 4294901760
    %1754 = vmatpush1.msra.mxu0 %v1753
    %1755 = vmatprep.subr.mxu0 0.0
    %v1756 = vand.u32 %v42, 4294901760
    %1757 = vmatpush1.msra.mxu0 %v1756
    %1758 = vmatprep.subr.mxu0 0.0
    %v1759 = vand.u32 %v43, 4294901760
    %1760 = vmatpush1.msra.mxu0 %v1759
    %1761 = vmatprep.subr.mxu0 0.0
    %v1762 = vand.u32 %v44, 4294901760
    %1763 = vmatpush1.msra.mxu0 %v1762
    %1764 = vmatprep.subr.mxu0 0.0
    %v1765 = vand.u32 %v45, 4294901760
    %1766 = vmatpush1.msra.mxu0 %v1765
    %1767 = vmatprep.subr.mxu0 0.0
    %v1768 = vand.u32 %v46, 4294901760
    %1769 = vmatpush1.msra.mxu0 %v1768
    %1770 = vmatprep.subr.mxu0 0.0
    %v1771 = vand.u32 %v47, 4294901760
    %1772 = vmatpush1.msra.mxu0 %v1771
    %1773 = vmatprep.subr.mxu0 0.0
    %v1774 = vand.u32 %v48, 4294901760
    %1775 = vmatpush1.msra.mxu0 %v1774
    %v1776 = vand.u32 %v920, 4294901760
    %1777 = vmatprep.mubr.f32.mxu0 %v1776
    %v1778 = vand.u32 %v918, 4294901760
    %1779 = vmatmul.mubr.f32.gmra.mrb[0].mxu0 %v1778
    %v1780 = vpop.f32.mrb[0].mxu0
    %v1781 = vadd.f32 %v1677, %v1780
    %v1782 = vpop.f32.mrb[0].mxu0
    %1783 = vdwg.mxu0
    %s1784 = scalar_lea.vmem [#allocation2], 8
    %1785 = vst.msk [vmem:[%s1784 + $0x2] sm:$0xf] %vm915, %v1781
    // Predicated region
    $region10: #{tpu_custom_call.1} parent=1 // pred_check
      _
    $region11: #{tpu_custom_call.1} parent=1 // pred_check_branch
      %1787 = sbr.rel (0) target = $region13
    $region12: #{tpu_custom_call.1} parent=1 // pred_region
      %s1789 = ssub.s32 256, 256
      %1790 = vsyncadd [#allocation3], %s1789
      %s1791 = sshll.u32 [#allocation2], 4
      %s1792 = int_to_ptr.vmem [resolvable:$true] %s1791
      %1797 = dma.vmem_to_hbm [thread:$0]  %s1792, 256, %s2, [#allocation3], 128, 128, 8
    $region13: #{tpu_custom_call.1} parent=1 // pred_fallthru
      _
    // Predicated region
    $region14: #{tpu_custom_call.1} parent=1 // pred_check
      _
    $region15: #{tpu_custom_call.1} parent=1 // pred_check_branch
      %1799 = sbr.rel (0) target = $region17
    $region16: #{tpu_custom_call.1} parent=1 // pred_region
      %1800 = dma.done [#allocation3], 256
    $region17: #{tpu_custom_call.1} parent=1 // pred_fallthru
      _
    %1801 = vsyncpa [#allocation3], 1

</llo_original>
